<compile_context>
chip_gen: v7x
topology: tpu7x:2x2x1
jax: 0.10.0
libtpu: 0.0.40
codegen_flags: <defaults>
</compile_context>

<pallas_src>
import functools
import jax
import jax.numpy as jnp
from jax import lax
from jax.experimental import pallas as pl
from jax.experimental.pallas import tpu as pltpu


_TILE = 128   # pivot tile == lane width


# ----------------------------------------------------------------------------
# Pallas kernel: per-image clip + sigmoid + validity masks + blocked greedy NMS
# ----------------------------------------------------------------------------
def _filter_kernel(feat_ref, boxesT_ref,                 # inputs  (per-image blocks)
                   keep_ref, cbox_ref, sscore_ref,       # outputs (per-image blocks)
                   rows_ref, slab_ref,                   # scratch (VMEM)
                   *, K_pad, K_true, H, W, min_size, score_thresh, nms_thresh):
    T = _TILE
    n_tiles = K_pad // T
    fW, fH = float(W), float(H)
    scale = float(max(H, W)) + 1.0        # batched_nms level-offset separator

    # --------------------- prologue (row layout, lane-dense) -----------------
    b = feat_ref[0]                       # (8, K): x1,y1,x2,y2,obj,level,0,0
    cx1 = jnp.clip(b[0:1, :], 0.0, fW)
    cy1 = jnp.clip(b[1:2, :], 0.0, fH)
    cx2 = jnp.clip(b[2:3, :], 0.0, fW)
    cy2 = jnp.clip(b[3:4, :], 0.0, fH)

    # clipped boxes straight into the output rows (no concatenate / relayout)
    cbox_ref[0, 0:1, :] = cx1
    cbox_ref[0, 1:2, :] = cy1
    cbox_ref[0, 2:3, :] = cx2
    cbox_ref[0, 3:4, :] = cy2

    w = cx2 - cx1
    h = cy2 - cy1
    s = jax.nn.sigmoid(b[4:5, :])         # (1, K)  sigmoid on EUP
    sscore_ref[0] = s

    col = lax.broadcasted_iota(jnp.int32, (1, K_pad), 1)
    # remove_small_boxes + score threshold + explicit padding mask
    valid = (w >= min_size) & (h >= min_size) & (s >= score_thresh) & (col < K_true)

    lvl = b[5:6, :]                       # (1, K) float level index
    off = lvl * scale
    # level-offset coords + area, kept row-major in a small VMEM scratch
    rows_ref[0:1, :] = cx1 + off
    rows_ref[1:2, :] = cy1 + off
    rows_ref[2:3, :] = cx2 + off
    rows_ref[3:4, :] = cy2 + off
    rows_ref[4:5, :] = w * h

    keep_full = valid.astype(jnp.float32)                 # (1, K) running keep mask
    lane_t = lax.broadcasted_iota(jnp.int32, (1, T), 1)   # hoisted out of loops

    # --------------------- blocked greedy NMS --------------------------------
    # Candidates arrive pre-sorted by descending score (host glue), so array order
    # == score order and a kept box i suppresses every later box j with IoU > thresh.
    for t in range(n_tiles):
        t0 = t * T

        # pivot-side coords as (T, 1) columns from the pre-transposed input
        bt = boxesT_ref[0, t0:t0 + T, :]                  # (T, 8): x1,y1,x2,y2,level,...
        px1 = jnp.clip(bt[:, 0:1], 0.0, fW)
        py1 = jnp.clip(bt[:, 1:2], 0.0, fH)
        px2 = jnp.clip(bt[:, 2:3], 0.0, fW)
        py2 = jnp.clip(bt[:, 3:4], 0.0, fH)
        poff = bt[:, 4:5] * scale
        pox1 = px1 + poff
        poy1 = py1 + poff
        pox2 = px2 + poff
        poy2 = py2 + poff
        parea = (px2 - px1) * (py2 - py1)

        ox1r = rows_ref[0:1, :]
        oy1r = rows_ref[1:2, :]
        ox2r = rows_ref[2:3, :]
        oy2r = rows_ref[3:4, :]
        arear = rows_ref[4:5, :]

        # pre-thresholded 0/1 suppression slab (T, K): NO division, NO 0/0 path
        iw = jnp.maximum(jnp.minimum(pox2, ox2r) - jnp.maximum(pox1, ox1r), 0.0)
        ih = jnp.maximum(jnp.minimum(poy2, oy2r) - jnp.maximum(poy1, oy1r), 0.0)
        inter = iw * ih                                   # (T, K)
        union = parea + arear - inter
        rowg = t0 + lax.broadcasted_iota(jnp.int32, (T, 1), 0)
        sup = (inter > nms_thresh * union) & (col > rowg)
        slab_ref[...] = sup.astype(jnp.float32)

        # within-tile serial sweep: T iterations, each touching a single 128-lane vreg
        keep_tile0 = keep_full[:, t0:t0 + T]              # (1, T)

        def sweep(i, keep_tile):
            row = slab_ref[pl.ds(i, 1), pl.ds(t0, T)]     # (1, T) dynamic sublane row
            pivot = jnp.max(jnp.where(lane_t == i, keep_tile, 0.0),
                            axis=1, keepdims=True)        # (1, 1): is pivot i kept?
            return jnp.where((row > 0.5) & (pivot > 0.5), 0.0, keep_tile)

        keep_tile = lax.fori_loop(0, T, sweep, keep_tile0)

        # cross suppression of ALL later candidates in one MXU matmul:
        # supp[j] = sum_i keep_tile[i] * sup[i, j]  (slab already enforces j > i)
        keep8 = jnp.broadcast_to(keep_tile, (8, T))       # sublane broadcast (MXU-friendly M)
        supp = jnp.dot(keep8, slab_ref[...],
                       preferred_element_type=jnp.float32)[0:1, :]   # (1, K)
        keep_full = jnp.where(supp > 0.5, 0.0, keep_full)

    keep_ref[0] = keep_full


# ----------------------------------------------------------------------------
# Plain-JAX glue (level bookkeeping, per-level top-k, final compaction)
# ----------------------------------------------------------------------------
def _get_levels(num_images, num_anchors_per_level):
    lv = jnp.concatenate(
        [jnp.full((n,), i, dtype=jnp.float32) for i, n in enumerate(num_anchors_per_level)]
    )
    return jnp.broadcast_to(lv, (num_images, lv.shape[0]))


def _get_top_n_idx(pre_nms_top_n, objectness, num_anchors_per_level):
    idxs = []
    offset = 0
    for n in num_anchors_per_level:
        ob = lax.slice_in_dim(objectness, offset, offset + n, axis=1)
        k = min(pre_nms_top_n, n)
        _, top = lax.top_k(ob, k)
        idxs.append(top + offset)
        offset += n
    return jnp.concatenate(idxs, axis=1)


def filter_proposals(proposals, objectness, num_anchors_per_level, *,
                     pre_nms_top_n=1000, post_nms_top_n=1000,
                     nms_thresh=0.7, score_thresh=0.0, min_size=0.001,
                     img_shape=(512, 512)):
    """proposals: (N, A, 4) [x1,y1,x2,y2];  objectness: (N, A)."""
    N, A, _ = proposals.shape
    H, W = img_shape
    objectness = jnp.reshape(objectness, (N, -1)).astype(jnp.float32)
    proposals = proposals.astype(jnp.float32)
    levels = _get_levels(N, num_anchors_per_level)

    # stage 1: per-level pre-NMS top-k (glue: sort/gather)
    top_idx = _get_top_n_idx(pre_nms_top_n, objectness, num_anchors_per_level)   # (N, K)
    obj_k = jnp.take_along_axis(objectness, top_idx, axis=1)
    lvl_k = jnp.take_along_axis(levels, top_idx, axis=1)
    box_k = jnp.take_along_axis(proposals, top_idx[:, :, None], axis=1)          # (N, K, 4)
    K = obj_k.shape[1]

    # pre-sort each image by descending objectness (sigmoid is monotone) so the
    # kernel's greedy NMS can walk the array in score order.
    order = jnp.argsort(-obj_k, axis=1)
    obj_k = jnp.take_along_axis(obj_k, order, axis=1)
    lvl_k = jnp.take_along_axis(lvl_k, order, axis=1)
    box_k = jnp.take_along_axis(box_k, order[:, :, None], axis=1)

    # pad K to a multiple of 128 (lane width); padded slots are masked in-kernel (col < K)
    K_pad = ((K + _TILE - 1) // _TILE) * _TILE
    if K_pad != K:
        p = K_pad - K
        obj_k = jnp.pad(obj_k, ((0, 0), (0, p)), constant_values=-1e30)
        lvl_k = jnp.pad(lvl_k, ((0, 0), (0, p)))
        box_k = jnp.pad(box_k, ((0, 0), (0, p), (0, 0)))

    # lane-dense packed row input (8, K): coords on sublanes 0-3, objectness, level
    feat = jnp.concatenate([
        jnp.transpose(box_k, (0, 2, 1)),                  # (N, 4, K_pad)
        obj_k[:, None, :],                                # (N, 1, K_pad)
        lvl_k[:, None, :],                                # (N, 1, K_pad)
        jnp.zeros((N, 2, K_pad), jnp.float32),
    ], axis=1)                                            # (N, 8, K_pad)

    # pre-transposed (column-layout) input so the kernel needs no in-kernel transpose
    boxesT = jnp.concatenate([
        box_k,                                            # (N, K_pad, 4)
        lvl_k[:, :, None],                                # (N, K_pad, 1)
        jnp.zeros((N, K_pad, 3), jnp.float32),
    ], axis=2)                                            # (N, K_pad, 8)

    kernel = functools.partial(
        _filter_kernel, K_pad=K_pad, K_true=K, H=H, W=W,
        min_size=float(min_size), score_thresh=float(score_thresh),
        nms_thresh=float(nms_thresh))

    keep_m, cbox, sscore = pl.pallas_call(
        kernel,
        out_shape=(
            jax.ShapeDtypeStruct((N, 1, K_pad), jnp.float32),   # keep mask
            jax.ShapeDtypeStruct((N, 4, K_pad), jnp.float32),   # clipped boxes
            jax.ShapeDtypeStruct((N, 1, K_pad), jnp.float32),   # sigmoid scores
        ),
        grid_spec=pltpu.PrefetchScalarGridSpec(
            num_scalar_prefetch=0,
            grid=(N,),
            in_specs=[
                pl.BlockSpec((1, 8, K_pad), lambda n: (n, 0, 0)),
                pl.BlockSpec((1, K_pad, 8), lambda n: (n, 0, 0)),
            ],
            out_specs=[
                pl.BlockSpec((1, 1, K_pad), lambda n: (n, 0, 0)),
                pl.BlockSpec((1, 4, K_pad), lambda n: (n, 0, 0)),
                pl.BlockSpec((1, 1, K_pad), lambda n: (n, 0, 0)),
            ],
            scratch_shapes=[
                pltpu.VMEM((8, K_pad), jnp.float32),       # offset coords + area (rows)
                pltpu.VMEM((_TILE, K_pad), jnp.float32),   # per-tile 0/1 suppression slab
            ],
        ),
        compiler_params=pltpu.CompilerParams(
            dimension_semantics=("parallel",),             # images independent -> v7x 2-TC
            vmem_limit_bytes=32 * 1024 * 1024),
    )(feat, boxesT)

    # stage 6 glue: compact kept entries (stable -> keeps score-descending order),
    # truncate to post_nms_top_n, return padded arrays + valid counts.
    keep = keep_m[:, 0, :] * (jnp.arange(K_pad)[None, :] < K)      # belt-and-braces pad mask
    order2 = jnp.argsort(-keep, axis=1)                            # stable
    sel = order2[:, :post_nms_top_n]
    cboxes_nk4 = jnp.transpose(cbox, (0, 2, 1))                    # (N, K_pad, 4)
    boxes_out = jnp.take_along_axis(cboxes_nk4, sel[:, :, None], axis=1)
    scores_out = jnp.take_along_axis(sscore[:, 0, :], sel, axis=1)
    num_valid = jnp.minimum(jnp.sum(keep, axis=1), post_nms_top_n).astype(jnp.int32)
    vmask = (jnp.arange(post_nms_top_n)[None, :] < num_valid[:, None]).astype(jnp.float32)
    boxes_out = boxes_out * vmask[:, :, None]
    scores_out = scores_out * vmask
    # TODO(synk): PyTorch returns Python lists of variable-length tensors; here we
    # return fixed-size padded arrays plus a per-image valid count instead.
    return boxes_out, scores_out, num_valid


# ----------------------------------------------------------------------------
if __name__ == "__main__":
    key = jax.random.PRNGKey(0)
    N = 2
    num_anchors_per_level = [128, 128]
    A = sum(num_anchors_per_level)
    img_shape = (64, 64)

    k1, k2, k3, k4 = jax.random.split(key, 4)
    x1y1 = jax.random.uniform(k1, (N, A, 2), minval=-8.0, maxval=60.0)
    wh = jax.random.uniform(k2, (N, A, 2), minval=0.0, maxval=16.0)
    proposals = jnp.concatenate([x1y1, x1y1 + wh], axis=-1)        # (N, A, 4)
    objectness = jax.random.normal(k3, (N, A), dtype=jnp.float32)  # (N, A)

    boxes, scores, counts = filter_proposals(
        proposals, objectness, num_anchors_per_level,
        pre_nms_top_n=64, post_nms_top_n=32,
        nms_thresh=0.7, score_thresh=0.0, min_size=0.001,
        img_shape=img_shape)

    jax.block_until_ready((boxes, scores, counts))
    assert boxes.shape == (N, 32, 4) and scores.shape == (N, 32)
    assert bool(jnp.all(jnp.isfinite(boxes))) and bool(jnp.all(jnp.isfinite(scores)))
    print("KERNEL_OK")
</pallas_src>

<mosaic_0001>
module attributes {stable_mosaic.version = 11 : i64} {
  func.func @_filter_kernel(%arg0: i32, %arg1: memref<1x8x128xf32, #tpu.memory_space<vmem>>, %arg2: memref<1x128x8xf32, #tpu.memory_space<vmem>>, %arg3: memref<1x1x128xf32, #tpu.memory_space<vmem>>, %arg4: memref<1x4x128xf32, #tpu.memory_space<vmem>>, %arg5: memref<1x1x128xf32, #tpu.memory_space<vmem>>, %arg6: memref<8x128xf32, #tpu.memory_space<vmem>>, %arg7: memref<128x128xf32, #tpu.memory_space<vmem>>) attributes {dimension_semantics = [#tpu.dimension_semantics<parallel>], iteration_bounds = array<i64: 2>, scalar_prefetch = 0 : i64, scratch_operands = 2 : i64, tpu.core_type = #tpu.core_type<tc>, window_params = [{transform_indices = @transform_0, window_bounds = array<i64: 1, 8, 128>}, {transform_indices = @transform_1, window_bounds = array<i64: 1, 128, 8>}, {transform_indices = @transform_2, window_bounds = array<i64: 1, 1, 128>}, {transform_indices = @transform_3, window_bounds = array<i64: 1, 4, 128>}, {transform_indices = @transform_4, window_bounds = array<i64: 1, 1, 128>}]} {
    %c0 = arith.constant 0 : index
    %c0_0 = arith.constant 0 : index
    %c0_1 = arith.constant 0 : index
    %0 = vector.load %arg1[%c0, %c0_0, %c0_1] : memref<1x8x128xf32, #tpu.memory_space<vmem>>, vector<1x8x128xf32>
    %1 = vector.shape_cast %0 : vector<1x8x128xf32> to vector<8x128xf32>
    %2 = vector.extract_strided_slice %1 {offsets = [0, 0], sizes = [1, 128], strides = [1, 1]} : vector<8x128xf32> to vector<1x128xf32>
    %cst = arith.constant 0.000000e+00 : f32
    %cst_2 = arith.constant 6.400000e+01 : f32
    %3 = vector.broadcast %cst : f32 to vector<1x128xf32>
    %4 = arith.maximumf %3, %2 : vector<1x128xf32>
    %5 = vector.broadcast %cst_2 : f32 to vector<1x128xf32>
    %6 = arith.minimumf %5, %4 : vector<1x128xf32>
    %7 = vector.extract_strided_slice %1 {offsets = [1, 0], sizes = [1, 128], strides = [1, 1]} : vector<8x128xf32> to vector<1x128xf32>
    %cst_3 = arith.constant 0.000000e+00 : f32
    %cst_4 = arith.constant 6.400000e+01 : f32
    %8 = vector.broadcast %cst_3 : f32 to vector<1x128xf32>
    %9 = arith.maximumf %8, %7 : vector<1x128xf32>
    %10 = vector.broadcast %cst_4 : f32 to vector<1x128xf32>
    %11 = arith.minimumf %10, %9 : vector<1x128xf32>
    %12 = vector.extract_strided_slice %1 {offsets = [2, 0], sizes = [1, 128], strides = [1, 1]} : vector<8x128xf32> to vector<1x128xf32>
    %cst_5 = arith.constant 0.000000e+00 : f32
    %cst_6 = arith.constant 6.400000e+01 : f32
    %13 = vector.broadcast %cst_5 : f32 to vector<1x128xf32>
    %14 = arith.maximumf %13, %12 : vector<1x128xf32>
    %15 = vector.broadcast %cst_6 : f32 to vector<1x128xf32>
    %16 = arith.minimumf %15, %14 : vector<1x128xf32>
    %17 = vector.extract_strided_slice %1 {offsets = [3, 0], sizes = [1, 128], strides = [1, 1]} : vector<8x128xf32> to vector<1x128xf32>
    %cst_7 = arith.constant 0.000000e+00 : f32
    %cst_8 = arith.constant 6.400000e+01 : f32
    %18 = vector.broadcast %cst_7 : f32 to vector<1x128xf32>
    %19 = arith.maximumf %18, %17 : vector<1x128xf32>
    %20 = vector.broadcast %cst_8 : f32 to vector<1x128xf32>
    %21 = arith.minimumf %20, %19 : vector<1x128xf32>
    %c0_9 = arith.constant 0 : index
    %c0_10 = arith.constant 0 : index
    %c0_11 = arith.constant 0 : index
    %22 = vector.load %arg4[%c0_9, %c0_10, %c0_11] : memref<1x4x128xf32, #tpu.memory_space<vmem>>, vector<1x1x128xf32>
    %23 = vector.shape_cast %22 : vector<1x1x128xf32> to vector<1x128xf32>
    %24 = vector.shape_cast %6 : vector<1x128xf32> to vector<1x1x128xf32>
    tpu.vector_store %arg4[%c0_9, %c0_10, %c0_11], %24 {strides = array<i32>} : memref<1x4x128xf32, #tpu.memory_space<vmem>>, vector<1x1x128xf32>,
    %c0_12 = arith.constant 0 : index
    %c1 = arith.constant 1 : index
    %c0_13 = arith.constant 0 : index
    %25 = vector.load %arg4[%c0_12, %c1, %c0_13] : memref<1x4x128xf32, #tpu.memory_space<vmem>>, vector<1x1x128xf32>
    %26 = vector.shape_cast %25 : vector<1x1x128xf32> to vector<1x128xf32>
    %27 = vector.shape_cast %11 : vector<1x128xf32> to vector<1x1x128xf32>
    tpu.vector_store %arg4[%c0_12, %c1, %c0_13], %27 {strides = array<i32>} : memref<1x4x128xf32, #tpu.memory_space<vmem>>, vector<1x1x128xf32>,
    %c0_14 = arith.constant 0 : index
    %c2 = arith.constant 2 : index
    %c0_15 = arith.constant 0 : index
    %28 = vector.load %arg4[%c0_14, %c2, %c0_15] : memref<1x4x128xf32, #tpu.memory_space<vmem>>, vector<1x1x128xf32>
    %29 = vector.shape_cast %28 : vector<1x1x128xf32> to vector<1x128xf32>
    %30 = vector.shape_cast %16 : vector<1x128xf32> to vector<1x1x128xf32>
    tpu.vector_store %arg4[%c0_14, %c2, %c0_15], %30 {strides = array<i32>} : memref<1x4x128xf32, #tpu.memory_space<vmem>>, vector<1x1x128xf32>,
    %c0_16 = arith.constant 0 : index
    %c3 = arith.constant 3 : index
    %c0_17 = arith.constant 0 : index
    %31 = vector.load %arg4[%c0_16, %c3, %c0_17] : memref<1x4x128xf32, #tpu.memory_space<vmem>>, vector<1x1x128xf32>
    %32 = vector.shape_cast %31 : vector<1x1x128xf32> to vector<1x128xf32>
    %33 = vector.shape_cast %21 : vector<1x128xf32> to vector<1x1x128xf32>
    tpu.vector_store %arg4[%c0_16, %c3, %c0_17], %33 {strides = array<i32>} : memref<1x4x128xf32, #tpu.memory_space<vmem>>, vector<1x1x128xf32>,
    %34 = arith.subf %16, %6 : vector<1x128xf32>
    %35 = arith.subf %21, %11 : vector<1x128xf32>
    %36 = vector.extract_strided_slice %1 {offsets = [4, 0], sizes = [1, 128], strides = [1, 1]} : vector<8x128xf32> to vector<1x128xf32>
    %37 = arith.negf %36 : vector<1x128xf32>
    %38 = math.exp %37 : vector<1x128xf32>
    %cst_18 = arith.constant 1.000000e+00 : f32
    %39 = vector.broadcast %cst_18 : f32 to vector<1x128xf32>
    %40 = arith.addf %39, %38 : vector<1x128xf32>
    %41 = arith.divf %39, %40 : vector<1x128xf32>
    %c0_19 = arith.constant 0 : index
    %c0_20 = arith.constant 0 : index
    %c0_21 = arith.constant 0 : index
    %42 = vector.load %arg5[%c0_19, %c0_20, %c0_21] : memref<1x1x128xf32, #tpu.memory_space<vmem>>, vector<1x1x128xf32>
    %43 = vector.shape_cast %42 : vector<1x1x128xf32> to vector<1x128xf32>
    %44 = vector.shape_cast %41 : vector<1x128xf32> to vector<1x1x128xf32>
    tpu.vector_store %arg5[%c0_19, %c0_20, %c0_21], %44 {strides = array<i32>} : memref<1x1x128xf32, #tpu.memory_space<vmem>>, vector<1x1x128xf32>,
    %45 = tpu.iota {dimensions = array<i32: 1>} : vector<1x128xi32>
    %cst_22 = arith.constant 1.000000e-03 : f32
    %46 = vector.broadcast %cst_22 : f32 to vector<1x128xf32>
    %47 = arith.cmpf oge, %34, %46 : vector<1x128xf32>
    %cst_23 = arith.constant 1.000000e-03 : f32
    %48 = vector.broadcast %cst_23 : f32 to vector<1x128xf32>
    %49 = arith.cmpf oge, %35, %48 : vector<1x128xf32>
    %50 = arith.andi %47, %49 : vector<1x128xi1>
    %cst_24 = arith.constant 0.000000e+00 : f32
    %51 = vector.broadcast %cst_24 : f32 to vector<1x128xf32>
    %52 = arith.cmpf oge, %41, %51 : vector<1x128xf32>
    %53 = arith.andi %50, %52 : vector<1x128xi1>
    %c128_i32 = arith.constant 128 : i32
    %54 = vector.broadcast %c128_i32 : i32 to vector<1x128xi32>
    %55 = arith.cmpi slt, %45, %54 : vector<1x128xi32>
    %56 = arith.andi %53, %55 : vector<1x128xi1>
    %57 = vector.extract_strided_slice %1 {offsets = [5, 0], sizes = [1, 128], strides = [1, 1]} : vector<8x128xf32> to vector<1x128xf32>
    %cst_25 = arith.constant 6.500000e+01 : f32
    %58 = vector.broadcast %cst_25 : f32 to vector<1x128xf32>
    %59 = arith.mulf %57, %58 : vector<1x128xf32>
    %60 = arith.addf %6, %59 : vector<1x128xf32>
    %c0_26 = arith.constant 0 : index
    %c0_27 = arith.constant 0 : index
    %61 = vector.load %arg6[%c0_26, %c0_27] : memref<8x128xf32, #tpu.memory_space<vmem>>, vector<1x128xf32>
    tpu.vector_store %arg6[%c0_26, %c0_27], %60 {strides = array<i32>} : memref<8x128xf32, #tpu.memory_space<vmem>>, vector<1x128xf32>,
    %62 = arith.addf %11, %59 : vector<1x128xf32>
    %c1_28 = arith.constant 1 : index
    %c0_29 = arith.constant 0 : index
    %63 = vector.load %arg6[%c1_28, %c0_29] : memref<8x128xf32, #tpu.memory_space<vmem>>, vector<1x128xf32>
    tpu.vector_store %arg6[%c1_28, %c0_29], %62 {strides = array<i32>} : memref<8x128xf32, #tpu.memory_space<vmem>>, vector<1x128xf32>,
    %64 = arith.addf %16, %59 : vector<1x128xf32>
    %c2_30 = arith.constant 2 : index
    %c0_31 = arith.constant 0 : index
    %65 = vector.load %arg6[%c2_30, %c0_31] : memref<8x128xf32, #tpu.memory_space<vmem>>, vector<1x128xf32>
    tpu.vector_store %arg6[%c2_30, %c0_31], %64 {strides = array<i32>} : memref<8x128xf32, #tpu.memory_space<vmem>>, vector<1x128xf32>,
    %66 = arith.addf %21, %59 : vector<1x128xf32>
    %c3_32 = arith.constant 3 : index
    %c0_33 = arith.constant 0 : index
    %67 = vector.load %arg6[%c3_32, %c0_33] : memref<8x128xf32, #tpu.memory_space<vmem>>, vector<1x128xf32>
    tpu.vector_store %arg6[%c3_32, %c0_33], %66 {strides = array<i32>} : memref<8x128xf32, #tpu.memory_space<vmem>>, vector<1x128xf32>,
    %68 = arith.mulf %34, %35 : vector<1x128xf32>
    %c4 = arith.constant 4 : index
    %c0_34 = arith.constant 0 : index
    %69 = vector.load %arg6[%c4, %c0_34] : memref<8x128xf32, #tpu.memory_space<vmem>>, vector<1x128xf32>
    tpu.vector_store %arg6[%c4, %c0_34], %68 {strides = array<i32>} : memref<8x128xf32, #tpu.memory_space<vmem>>, vector<1x128xf32>,
    %70 = arith.extui %56 : vector<1x128xi1> to vector<1x128xi32>
    %71 = arith.sitofp %70 : vector<1x128xi32> to vector<1x128xf32>
    %72 = tpu.iota {dimensions = array<i32: 1>} : vector<1x128xi32>
    %c0_35 = arith.constant 0 : index
    %c0_36 = arith.constant 0 : index
    %c0_37 = arith.constant 0 : index
    %73 = vector.load %arg2[%c0_35, %c0_36, %c0_37] : memref<1x128x8xf32, #tpu.memory_space<vmem>>, vector<1x128x8xf32>
    %74 = vector.shape_cast %73 : vector<1x128x8xf32> to vector<128x8xf32>
    %75 = vector.extract_strided_slice %74 {offsets = [0, 0], sizes = [128, 1], strides = [1, 1]} : vector<128x8xf32> to vector<128x1xf32>
    %cst_38 = arith.constant 0.000000e+00 : f32
    %cst_39 = arith.constant 6.400000e+01 : f32
    %76 = vector.broadcast %cst_38 : f32 to vector<128x1xf32>
    %77 = arith.maximumf %76, %75 : vector<128x1xf32>
    %78 = vector.broadcast %cst_39 : f32 to vector<128x1xf32>
    %79 = arith.minimumf %78, %77 : vector<128x1xf32>
    %80 = vector.extract_strided_slice %74 {offsets = [0, 1], sizes = [128, 1], strides = [1, 1]} : vector<128x8xf32> to vector<128x1xf32>
    %cst_40 = arith.constant 0.000000e+00 : f32
    %cst_41 = arith.constant 6.400000e+01 : f32
    %81 = vector.broadcast %cst_40 : f32 to vector<128x1xf32>
    %82 = arith.maximumf %81, %80 : vector<128x1xf32>
    %83 = vector.broadcast %cst_41 : f32 to vector<128x1xf32>
    %84 = arith.minimumf %83, %82 : vector<128x1xf32>
    %85 = vector.extract_strided_slice %74 {offsets = [0, 2], sizes = [128, 1], strides = [1, 1]} : vector<128x8xf32> to vector<128x1xf32>
    %cst_42 = arith.constant 0.000000e+00 : f32
    %cst_43 = arith.constant 6.400000e+01 : f32
    %86 = vector.broadcast %cst_42 : f32 to vector<128x1xf32>
    %87 = arith.maximumf %86, %85 : vector<128x1xf32>
    %88 = vector.broadcast %cst_43 : f32 to vector<128x1xf32>
    %89 = arith.minimumf %88, %87 : vector<128x1xf32>
    %90 = vector.extract_strided_slice %74 {offsets = [0, 3], sizes = [128, 1], strides = [1, 1]} : vector<128x8xf32> to vector<128x1xf32>
    %cst_44 = arith.constant 0.000000e+00 : f32
    %cst_45 = arith.constant 6.400000e+01 : f32
    %91 = vector.broadcast %cst_44 : f32 to vector<128x1xf32>
    %92 = arith.maximumf %91, %90 : vector<128x1xf32>
    %93 = vector.broadcast %cst_45 : f32 to vector<128x1xf32>
    %94 = arith.minimumf %93, %92 : vector<128x1xf32>
    %95 = vector.extract_strided_slice %74 {offsets = [0, 4], sizes = [128, 1], strides = [1, 1]} : vector<128x8xf32> to vector<128x1xf32>
    %cst_46 = arith.constant 6.500000e+01 : f32
    %96 = vector.broadcast %cst_46 : f32 to vector<128x1xf32>
    %97 = arith.mulf %95, %96 : vector<128x1xf32>
    %98 = arith.addf %79, %97 : vector<128x1xf32>
    %99 = arith.addf %84, %97 : vector<128x1xf32>
    %100 = arith.addf %89, %97 : vector<128x1xf32>
    %101 = arith.addf %94, %97 : vector<128x1xf32>
    %102 = arith.subf %89, %79 : vector<128x1xf32>
    %103 = arith.subf %94, %84 : vector<128x1xf32>
    %104 = arith.mulf %102, %103 : vector<128x1xf32>
    %c0_47 = arith.constant 0 : index
    %c0_48 = arith.constant 0 : index
    %105 = vector.load %arg6[%c0_47, %c0_48] : memref<8x128xf32, #tpu.memory_space<vmem>>, vector<1x128xf32>
    %c1_49 = arith.constant 1 : index
    %c0_50 = arith.constant 0 : index
    %106 = vector.load %arg6[%c1_49, %c0_50] : memref<8x128xf32, #tpu.memory_space<vmem>>, vector<1x128xf32>
    %c2_51 = arith.constant 2 : index
    %c0_52 = arith.constant 0 : index
    %107 = vector.load %arg6[%c2_51, %c0_52] : memref<8x128xf32, #tpu.memory_space<vmem>>, vector<1x128xf32>
    %c3_53 = arith.constant 3 : index
    %c0_54 = arith.constant 0 : index
    %108 = vector.load %arg6[%c3_53, %c0_54] : memref<8x128xf32, #tpu.memory_space<vmem>>, vector<1x128xf32>
    %c4_55 = arith.constant 4 : index
    %c0_56 = arith.constant 0 : index
    %109 = vector.load %arg6[%c4_55, %c0_56] : memref<8x128xf32, #tpu.memory_space<vmem>>, vector<1x128xf32>
    %110 = vector.broadcast %100 : vector<128x1xf32> to vector<128x128xf32>
    %111 = vector.broadcast %107 : vector<1x128xf32> to vector<128x128xf32>
    %112 = arith.minimumf %110, %111 : vector<128x128xf32>
    %113 = vector.broadcast %98 : vector<128x1xf32> to vector<128x128xf32>
    %114 = vector.broadcast %105 : vector<1x128xf32> to vector<128x128xf32>
    %115 = arith.maximumf %113, %114 : vector<128x128xf32>
    %116 = arith.subf %112, %115 : vector<128x128xf32>
    %cst_57 = arith.constant 0.000000e+00 : f32
    %117 = vector.broadcast %cst_57 : f32 to vector<128x128xf32>
    %118 = arith.maximumf %116, %117 : vector<128x128xf32>
    %119 = vector.broadcast %101 : vector<128x1xf32> to vector<128x128xf32>
    %120 = vector.broadcast %108 : vector<1x128xf32> to vector<128x128xf32>
    %121 = arith.minimumf %119, %120 : vector<128x128xf32>
    %122 = vector.broadcast %99 : vector<128x1xf32> to vector<128x128xf32>
    %123 = vector.broadcast %106 : vector<1x128xf32> to vector<128x128xf32>
    %124 = arith.maximumf %122, %123 : vector<128x128xf32>
    %125 = arith.subf %121, %124 : vector<128x128xf32>
    %cst_58 = arith.constant 0.000000e+00 : f32
    %126 = vector.broadcast %cst_58 : f32 to vector<128x128xf32>
    %127 = arith.maximumf %125, %126 : vector<128x128xf32>
    %128 = arith.mulf %118, %127 : vector<128x128xf32>
    %129 = vector.broadcast %104 : vector<128x1xf32> to vector<128x128xf32>
    %130 = vector.broadcast %109 : vector<1x128xf32> to vector<128x128xf32>
    %131 = arith.addf %129, %130 : vector<128x128xf32>
    %132 = arith.subf %131, %128 : vector<128x128xf32>
    %133 = tpu.iota {dimensions = array<i32: 0>} : vector<128x1xi32>
    %c0_i32 = arith.constant 0 : i32
    %134 = vector.broadcast %c0_i32 : i32 to vector<128x1xi32>
    %135 = arith.addi %134, %133 : vector<128x1xi32>
    %cst_59 = arith.constant 0.699999988 : f32
    %136 = vector.broadcast %cst_59 : f32 to vector<128x128xf32>
    %137 = arith.mulf %136, %132 : vector<128x128xf32>
    %138 = arith.cmpf ogt, %128, %137 : vector<128x128xf32>
    %139 = vector.broadcast %45 : vector<1x128xi32> to vector<128x128xi32>
    %140 = vector.broadcast %135 : vector<128x1xi32> to vector<128x128xi32>
    %141 = arith.cmpi sgt, %139, %140 : vector<128x128xi32>
    %142 = arith.andi %138, %141 : vector<128x128xi1>
    %143 = arith.extui %142 : vector<128x128xi1> to vector<128x128xi32>
    %144 = arith.sitofp %143 : vector<128x128xi32> to vector<128x128xf32>
    %c0_60 = arith.constant 0 : index
    %c0_61 = arith.constant 0 : index
    %145 = vector.load %arg7[%c0_60, %c0_61] : memref<128x128xf32, #tpu.memory_space<vmem>>, vector<128x128xf32>
    tpu.vector_store %arg7[%c0_60, %c0_61], %144 {strides = array<i32>} : memref<128x128xf32, #tpu.memory_space<vmem>>, vector<128x128xf32>,
    %c0_i32_62 = arith.constant 0 : i32
    %c128_i32_63 = arith.constant 128 : i32
    %146 = arith.addi %c0_i32_62, %c128_i32_63 : i32
    %c1_i32 = arith.constant 1 : i32
    %147 = scf.for %arg8 = %c0_i32_62 to %146 step %c1_i32 iter_args(%arg9 = %71) -> (vector<1x128xf32>)  : i32 {
      %160 = arith.index_cast %arg8 : i32 to index
      %c0_73 = arith.constant 0 : index
      %161 = vector.load %arg7[%160, %c0_73] : memref<128x128xf32, #tpu.memory_space<vmem>>, vector<1x128xf32>
      %162 = vector.broadcast %arg8 : i32 to vector<1x128xi32>
      %163 = arith.cmpi eq, %72, %162 : vector<1x128xi32>
      %cst_74 = arith.constant 0.000000e+00 : f32
      %164 = vector.broadcast %cst_74 : f32 to vector<1x128xf32>
      %165 = arith.select %163, %arg9, %164 : vector<1x128xi1>, vector<1x128xf32>
      %cst_75 = arith.constant dense<0xFF800000> : vector<1xf32>
      %166 = vector.multi_reduction <maximumf>, %165, %cst_75 [1] : vector<1x128xf32> to vector<1xf32>
      %167 = vector.shape_cast %166 : vector<1xf32> to vector<1x1xf32>
      %cst_76 = arith.constant 5.000000e-01 : f32
      %168 = vector.broadcast %cst_76 : f32 to vector<1x128xf32>
      %169 = arith.cmpf ogt, %161, %168 : vector<1x128xf32>
      %cst_77 = arith.constant 5.000000e-01 : f32
      %170 = vector.broadcast %cst_77 : f32 to vector<1x1xf32>
      %171 = arith.cmpf ogt, %167, %170 : vector<1x1xf32>
      %172 = vector.broadcast %171 : vector<1x1xi1> to vector<1x128xi1>
      %173 = arith.andi %169, %172 : vector<1x128xi1>
      %cst_78 = arith.constant 0.000000e+00 : f32
      %174 = vector.broadcast %cst_78 : f32 to vector<1x128xf32>
      %175 = arith.select %173, %174, %arg9 : vector<1x128xi1>, vector<1x128xf32>
      scf.yield %175 : vector<1x128xf32>
    }
    %c128_i32_64 = arith.constant 128 : i32
    %148 = vector.shape_cast %147 : vector<1x128xf32> to vector<1x128xf32>
    %149 = vector.broadcast %148 : vector<1x128xf32> to vector<8x128xf32>
    %c0_65 = arith.constant 0 : index
    %c0_66 = arith.constant 0 : index
    %150 = vector.load %arg7[%c0_65, %c0_66] : memref<128x128xf32, #tpu.memory_space<vmem>>, vector<128x128xf32>
    %cst_67 = arith.constant dense<0.000000e+00> : vector<8x128xf32>
    %151 = tpu.matmul %149, %150, %cst_67 {dimension_numbers = #tpu.dot_dimension_numbers<[1], [0], [0], [1], [0, 0, 1, 1], [], []>} : vector<8x128xf32>, vector<128x128xf32>, vector<8x128xf32> -> vector<8x128xf32>
    %152 = vector.extract_strided_slice %151 {offsets = [0, 0], sizes = [1, 128], strides = [1, 1]} : vector<8x128xf32> to vector<1x128xf32>
    %cst_68 = arith.constant 5.000000e-01 : f32
    %153 = vector.broadcast %cst_68 : f32 to vector<1x128xf32>
    %154 = arith.cmpf ogt, %152, %153 : vector<1x128xf32>
    %cst_69 = arith.constant 0.000000e+00 : f32
    %155 = vector.broadcast %cst_69 : f32 to vector<1x128xf32>
    %156 = arith.select %154, %155, %71 : vector<1x128xi1>, vector<1x128xf32>
    %c0_70 = arith.constant 0 : index
    %c0_71 = arith.constant 0 : index
    %c0_72 = arith.constant 0 : index
    %157 = vector.load %arg3[%c0_70, %c0_71, %c0_72] : memref<1x1x128xf32, #tpu.memory_space<vmem>>, vector<1x1x128xf32>
    %158 = vector.shape_cast %157 : vector<1x1x128xf32> to vector<1x128xf32>
    %159 = vector.shape_cast %156 : vector<1x128xf32> to vector<1x1x128xf32>
    tpu.vector_store %arg3[%c0_70, %c0_71, %c0_72], %159 {strides = array<i32>} : memref<1x1x128xf32, #tpu.memory_space<vmem>>, vector<1x1x128xf32>,
    return
  }
  func.func @transform_0(%arg0: i32) -> (i32, i32, i32) {
    %c0_i32 = arith.constant 0 : i32
    %c0_i32_0 = arith.constant 0 : i32
    %c0_i32_1 = arith.constant 0 : i32
    return %arg0, %c0_i32, %c0_i32_0 : i32, i32, i32
  }
  func.func @transform_1(%arg0: i32) -> (i32, i32, i32) {
    %c0_i32 = arith.constant 0 : i32
    %c0_i32_0 = arith.constant 0 : i32
    %c0_i32_1 = arith.constant 0 : i32
    return %arg0, %c0_i32, %c0_i32_0 : i32, i32, i32
  }
  func.func @transform_2(%arg0: i32) -> (i32, i32, i32) {
    %c0_i32 = arith.constant 0 : i32
    %c0_i32_0 = arith.constant 0 : i32
    %c0_i32_1 = arith.constant 0 : i32
    return %arg0, %c0_i32, %c0_i32_0 : i32, i32, i32
  }
  func.func @transform_3(%arg0: i32) -> (i32, i32, i32) {
    %c0_i32 = arith.constant 0 : i32
    %c0_i32_0 = arith.constant 0 : i32
    %c0_i32_1 = arith.constant 0 : i32
    return %arg0, %c0_i32, %c0_i32_0 : i32, i32, i32
  }
  func.func @transform_4(%arg0: i32) -> (i32, i32, i32) {
    %c0_i32 = arith.constant 0 : i32
    %c0_i32_0 = arith.constant 0 : i32
    %c0_i32_1 = arith.constant 0 : i32
    return %arg0, %c0_i32, %c0_i32_0 : i32, i32, i32
  }
}

</mosaic_0001>

<llo_original>
// kernel: tpu_custom_call.1
$region0: #{tpu_custom_call.1}
  #allocation0 [shape = 'u32[]', space=smem, size = 0x4, offset = 0x4, fixed_abs, tag = 'smem constant byte address 0x4 - core index']
  #allocation1 [shape = 'u32[144,128]{1,0:T(1,128)}', space=vmem, size = 0x12000, scoped, tag = 'internal scratch']
  #allocation2 [shape = 'f32[8,128]{1,0:T(8,128)}', space=vmem, size = 0x1000, scoped, tag = 'scratch operand']
  #allocation3 [shape = 'f32[128,128]{1,0:T(8,128)}', space=vmem, size = 0x10000, scoped, tag = 'scratch operand']
  %s0 = inlined_call_operand.vmem [shape: f32[2,8,128], index: 0, kind: input, shape index: {}]
  %s1 = inlined_call_operand.vmem [shape: f32[2,128,8], index: 1, kind: input, shape index: {}]
  %s2 = inlined_call_operand.hbm [shape: f32[2,1,128], index: 2, kind: output, shape index: {0}]
  %s3 = inlined_call_operand.hbm [shape: f32[2,4,128], index: 3, kind: output, shape index: {1}]
  %s4 = inlined_call_operand.hbm [shape: f32[2,1,128], index: 4, kind: output, shape index: {2}]
  %5 = xla_tuple %s2, %s3, %s4
  %s6 = sld [smem:[#allocation0]]
  $region64: #{tpu_custom_call.1} parent=0
    _
  %s8 = ssub.s32 1, %s6
  %s9 = scalar_select 0, %s8, %s6
  $region1: #{tpu_custom_call.1} parent=0
    #allocation4 [shape = 'u8[1024]{0}', space=vmem, size = 0x400, scoped, tag = 'output window, operand 0']
    #allocation5 [shape = 's32[2]{0}', space=sflag, size = 0x8, scoped, tag = 'scoped memory for tpu_custom_call.1']
    #allocation6 [shape = 'u8[4096]{0}', space=vmem, size = 0x1000, scoped, tag = 'output window, operand 1']
    #allocation7 [shape = 's32[2]{0}', space=sflag, size = 0x8, scoped, tag = 'scoped memory for tpu_custom_call.1']
    #allocation8 [shape = 'u8[1024]{0}', space=vmem, size = 0x400, scoped, tag = 'output window, operand 2']
    %10 = vsyncpa [#allocation5], 0
    %s11 = scalar_lea.sflag [#allocation5], 1
    %12 = vsyncpa %s11, 0
    %13 = vsyncpa [#allocation7], 0
    %s14 = scalar_lea.sflag [#allocation7], 1
    %15 = vsyncpa %s14, 0
    loop: start=0, step=1, limit=4
    $region2: #{tpu_custom_call.1} parent=1 // loop_pre_header
      _
    $region3: #{tpu_custom_call.1} parent=1 // loop_header
      %s17 = sphi 0, %s21
      %p18 = scmp.ge.s32.totalorder %s17, 4
      %s27 = sphi 0, %s29
      %s30 = sphi 0, %s27
      %s31 = sphi 0, %s30
      %s47 = sphi 0, %s31
      %s53 = sphi 0, %s55
      %s56 = sphi 0, %s53
      %s57 = sphi 0, %s56
      %s73 = sphi 0, %s57
      %s79 = sphi 0, %s81
      %s82 = sphi 0, %s79
      %s83 = sphi 0, %s82
      %s99 = sphi 0, %s83
      %s105 = sphi 0, %s107
      %s108 = sphi 0, %s105
      %s109 = sphi 0, %s108
      %s125 = sphi 0, %s109
      %s131 = sphi 0, %s133
      %s134 = sphi 0, %s131
      %s135 = sphi 0, %s134
      %s151 = sphi 0, %s135
    $region4: #{tpu_custom_call.1} parent=1 // loop_header_branch
      %20 = sbr.rel (%p18) target = $region8
    $region5: #{tpu_custom_call.1} parent=1 // loop_body
      %s22 = ssub.s32 %s17, 1
      %s23 = ssub.s32 %s17, 2
      %s24 = sadd.s32 %s17, 1
      %s25 = ssub.s32 %s17, %s24
      %p26 = scmp.eq.s32.totalorder %s25, 0
      %s28 = sadd.s32 %s27, 1
      %s29 = scalar_select %p26, %s27, %s28
      %p32 = pneg %p26
      %p33 = scmp.eq.s32.totalorder %s17, 1
      %p34 = por %p32, %p33
      %p35 = scmp.ne.s32.totalorder %s27, %s30
      %p36 = scmp.eq.s32.totalorder %s17, 0
      %p37 = por %p35, %p36
      %p38 = scmp.ne.s32.totalorder %s27, %s30
      %p39 = scmp.eq.s32.totalorder %s22, 1
      %p40 = por %p38, %p39
      %p41 = scmp.ne.s32.totalorder %s30, %s31
      %p42 = scmp.eq.s32.totalorder %s22, 0
      %p43 = por %p41, %p42
      %p44 = scmp.ne.s32.totalorder %s30, %s31
      %p45 = scmp.eq.s32.totalorder %s23, 1
      %p46 = por %p44, %p45
      %p48 = scmp.ne.s32.totalorder %s31, %s47
      %p49 = scmp.eq.s32.totalorder %s23, 0
      %p50 = por %p48, %p49
      %s51 = ssub.s32 %s17, %s24
      %p52 = scmp.eq.s32.totalorder %s51, 0
      %s54 = sadd.s32 %s53, 1
      %s55 = scalar_select %p52, %s53, %s54
      %p58 = pneg %p52
      %p59 = scmp.eq.s32.totalorder %s17, 1
      %p60 = por %p58, %p59
      %p61 = scmp.ne.s32.totalorder %s53, %s56
      %p62 = scmp.eq.s32.totalorder %s17, 0
      %p63 = por %p61, %p62
      %p64 = scmp.ne.s32.totalorder %s53, %s56
      %p65 = scmp.eq.s32.totalorder %s22, 1
      %p66 = por %p64, %p65
      %p67 = scmp.ne.s32.totalorder %s56, %s57
      %p68 = scmp.eq.s32.totalorder %s22, 0
      %p69 = por %p67, %p68
      %p70 = scmp.ne.s32.totalorder %s56, %s57
      %p71 = scmp.eq.s32.totalorder %s23, 1
      %p72 = por %p70, %p71
      %p74 = scmp.ne.s32.totalorder %s57, %s73
      %p75 = scmp.eq.s32.totalorder %s23, 0
      %p76 = por %p74, %p75
      %s77 = ssub.s32 %s17, %s24
      %p78 = scmp.eq.s32.totalorder %s77, 0
      %s80 = sadd.s32 %s79, 1
      %s81 = scalar_select %p78, %s79, %s80
      %p84 = pneg %p78
      %p85 = scmp.eq.s32.totalorder %s17, 1
      %p86 = por %p84, %p85
      %p87 = scmp.ne.s32.totalorder %s79, %s82
      %p88 = scmp.eq.s32.totalorder %s17, 0
      %p89 = por %p87, %p88
      %p90 = scmp.ne.s32.totalorder %s79, %s82
      %p91 = scmp.eq.s32.totalorder %s22, 1
      %p92 = por %p90, %p91
      %p93 = scmp.ne.s32.totalorder %s82, %s83
      %p94 = scmp.eq.s32.totalorder %s22, 0
      %p95 = por %p93, %p94
      %p96 = scmp.ne.s32.totalorder %s82, %s83
      %p97 = scmp.eq.s32.totalorder %s23, 1
      %p98 = por %p96, %p97
      %p100 = scmp.ne.s32.totalorder %s83, %s99
      %p101 = scmp.eq.s32.totalorder %s23, 0
      %p102 = por %p100, %p101
      %s103 = ssub.s32 %s17, %s24
      %p104 = scmp.eq.s32.totalorder %s103, 0
      %s106 = sadd.s32 %s105, 1
      %s107 = scalar_select %p104, %s105, %s106
      %p110 = pneg %p104
      %p111 = scmp.eq.s32.totalorder %s17, 1
      %p112 = por %p110, %p111
      %p113 = scmp.ne.s32.totalorder %s105, %s108
      %p114 = scmp.eq.s32.totalorder %s17, 0
      %p115 = por %p113, %p114
      %p116 = scmp.ne.s32.totalorder %s105, %s108
      %p117 = scmp.eq.s32.totalorder %s22, 1
      %p118 = por %p116, %p117
      %p119 = scmp.ne.s32.totalorder %s108, %s109
      %p120 = scmp.eq.s32.totalorder %s22, 0
      %p121 = por %p119, %p120
      %p122 = scmp.ne.s32.totalorder %s108, %s109
      %p123 = scmp.eq.s32.totalorder %s23, 1
      %p124 = por %p122, %p123
      %p126 = scmp.ne.s32.totalorder %s109, %s125
      %p127 = scmp.eq.s32.totalorder %s23, 0
      %p128 = por %p126, %p127
      %s129 = ssub.s32 %s17, %s24
      %p130 = scmp.eq.s32.totalorder %s129, 0
      %s132 = sadd.s32 %s131, 1
      %s133 = scalar_select %p130, %s131, %s132
      %p136 = pneg %p130
      %p137 = scmp.eq.s32.totalorder %s17, 1
      %p138 = por %p136, %p137
      %p139 = scmp.ne.s32.totalorder %s131, %s134
      %p140 = scmp.eq.s32.totalorder %s17, 0
      %p141 = por %p139, %p140
      %p142 = scmp.ne.s32.totalorder %s131, %s134
      %p143 = scmp.eq.s32.totalorder %s22, 1
      %p144 = por %p142, %p143
      %p145 = scmp.ne.s32.totalorder %s134, %s135
      %p146 = scmp.eq.s32.totalorder %s22, 0
      %p147 = por %p145, %p146
      %p148 = scmp.ne.s32.totalorder %s134, %s135
      %p149 = scmp.eq.s32.totalorder %s23, 1
      %p150 = por %p148, %p149
      %p152 = scmp.ne.s32.totalorder %s135, %s151
      %p153 = scmp.eq.s32.totalorder %s23, 0
      %p154 = por %p152, %p153
      %p155 = scmp.le.s32.totalorder 1, %s17
      %p156 = scmp.lt.s32.totalorder %s17, 3
      %p157 = pnand %p155, %p156
      %p158 = pneg %p157
      // Predicated region
      $region9: #{tpu_custom_call.1} parent=5 // pred_check
        _
      $region10: #{tpu_custom_call.1} parent=5 // pred_check_branch
        %160 = sbr.rel (%p157) target = $region12
      $region11: #{tpu_custom_call.1} parent=5 // pred_region
        %s161 = ssub.s32 %s17, 1
      $region12: #{tpu_custom_call.1} parent=5 // pred_fallthru
        _
      %p162 = scmp.lt.s32.totalorder %s17, 2
      // Predicated region
      $region13: #{tpu_custom_call.1} parent=5 // pred_check
        %p163 = pneg %p162
      $region14: #{tpu_custom_call.1} parent=5 // pred_check_branch
        %165 = sbr.rel (%p163) target = $region16
      $region15: #{tpu_custom_call.1} parent=5 // pred_region
        // Predicated region
        $region17: #{tpu_custom_call.1} parent=15 // pred_check
          %p166 = pneg %p37
        $region18: #{tpu_custom_call.1} parent=15 // pred_check_branch
          %168 = sbr.rel (%p166) target = $region20
        $region19: #{tpu_custom_call.1} parent=15 // pred_region
          %p169 = scmp.lt.s32.totalorder %s17, 1
          %s170 = scalar_select %p169, %s17, 1
          %s171 = smul.addr %s170, 8
          %s172 = scalar_lea.vmem %s0, %s171
        $region20: #{tpu_custom_call.1} parent=15 // pred_fallthru
          _
        // Predicated region
        $region21: #{tpu_custom_call.1} parent=15 // pred_check
          %p173 = pneg %p63
        $region22: #{tpu_custom_call.1} parent=15 // pred_check_branch
          %175 = sbr.rel (%p173) target = $region24
        $region23: #{tpu_custom_call.1} parent=15 // pred_region
          %p176 = scmp.lt.s32.totalorder %s17, 1
          %s177 = scalar_select %p176, %s17, 1
          %s178 = smul.addr %s177, 16
          %s179 = smul.addr %s178, 8
          %s180 = scalar_lea.vmem %s1, %s179
        $region24: #{tpu_custom_call.1} parent=15 // pred_fallthru
          _
      $region16: #{tpu_custom_call.1} parent=5 // pred_fallthru
        _
      %p181 = scmp.le.s32.totalorder 1, %s17
      %p182 = scmp.lt.s32.totalorder %s17, 3
      %p183 = pnand %p181, %p182
      %p184 = pneg %p183
      // Predicated region
      $region25: #{tpu_custom_call.1} parent=5 // pred_check
        _
      $region26: #{tpu_custom_call.1} parent=5 // pred_check_branch
        %186 = sbr.rel (%p183) target = $region28
      $region27: #{tpu_custom_call.1} parent=5 // pred_region
        %s187 = ssub.s32 %s17, 1
        %p188 = scmp.lt.s32.totalorder %s22, 1
        %s189 = scalar_select %p188, %s22, 1
        %s190 = smul.addr %s189, 8
        %s191 = scalar_lea.vmem %s0, %s190
        %p192 = pneg %p43
        %p193 = pneg %p40
        %p194 = scmp.lt.s32.totalorder %s22, 1
        %s195 = scalar_select %p194, %s22, 1
        %s196 = smul.addr %s195, 16
        %s197 = smul.addr %s196, 8
        %s198 = scalar_lea.vmem %s1, %s197
        %p199 = pneg %p69
        %p200 = pneg %p66
        %p201 = pneg %p95
        %p202 = pneg %p92
        %s203 = sand.u32 %s82, 1
        %s204 = scalar_lea.sflag [#allocation5], %s203
        %s205 = sand.u32 %s82, 1
        %s206 = scalar_lea.vmem [#allocation4], %s205
        %p207 = pneg %p121
        %p208 = pneg %p118
        %s209 = sand.u32 %s22, 1
        %s210 = scalar_lea.sflag [#allocation7], %s209
        %s211 = sand.u32 %s108, 1
        %s212 = smul.addr %s211, 4
        %s213 = scalar_lea.vmem [#allocation6], %s212
        %p214 = pneg %p147
        %p215 = pneg %p144
        %s216 = sand.u32 %s22, 1
        %s217 = scalar_lea.sflag [#allocation7], %s216
        %s218 = sand.u32 %s134, 1
        %s219 = scalar_lea.vmem [#allocation8], %s218
        %p220 = scmp.lt.s32.totalorder %s22, 1
        %s221 = scalar_select %p220, %s22, 1
        %s222 = smul.addr %s221, 8
        %s223 = scalar_lea.vmem %s0, %s222
        %p224 = scmp.lt.s32.totalorder %s22, 1
        %s225 = scalar_select %p224, %s22, 1
        %s226 = smul.addr %s225, 16
        %s227 = smul.addr %s226, 8
        %s228 = scalar_lea.vmem %s1, %s227
        %v229 = vld [vmem:[%s223] sm:$0xff]
        %v230 = vmax.f32 %v229, 0.0
        %v231 = vmin.f32 %v230, 64.0
        %232 = vst [vmem:[%s213] sm:$0x1] %v231
        %233 = vst [vmem:[%s213] sm:$0x2] %v231
        %234 = vst [vmem:[%s213] sm:$0x4] %v231
        %235 = vst [vmem:[%s213] sm:$0x8] %v231
        %v237 = vrot.slane %v231, 6
        %v239 = vsub.f32 %v231, %v237
        %v240 = vxor.u32 %v229, 2147483648
        %v241 = vmul.f32 %v240, 1.442695
        %v242 = vpow.pop %v241
        %v243 = vadd.f32 %v242, 1.0
        %v244 = vrcp.pop %v243
        %v245 = vmul.f32 1.0, %v244
        %246 = vst [vmem:[%s219 - $0x4] sm:$0x10] %v245
        %v247 = vlaneseq
        %v248 = vand.u32 %v247, 127
        %vm249 = vcmp.ge.f32.partialorder %v239, 0.001
        %v250 = vsel %vm249, 1, 0
        %v251 = vrot.slane %v250, 1
        %vm252 = vcmp.ne.s32.totalorder %v251, 0
        %vm253 = vmand %vm249, %vm252
        %vm254 = vcmp.ge.f32.partialorder %v245, 0.0
        %v255 = vsel %vm254, 1, 0
        %v256 = vrot.slane %v255, 2
        %vm257 = vcmp.ne.s32.totalorder %v256, 0
        %vm258 = vmand %vm253, %vm257
        %vm259 = vcmp.lt.s32.totalorder %v248, 128
        %vm260 = vmand %vm258, %vm259
        %v261 = vmul.f32 %v229, 65.0
        %v263 = vrot.slane %v261, 5
        %v265 = vadd.f32 %v231, %v263
        %266 = vst [vmem:[#allocation2] sm:$0x1] %v265
        %v267 = vrot.slane %v261, 4
        %v269 = vadd.f32 %v231, %v267
        %270 = vst [vmem:[#allocation2] sm:$0x2] %v269
        %v271 = vrot.slane %v261, 3
        %v273 = vadd.f32 %v231, %v271
        %274 = vst [vmem:[#allocation2] sm:$0x4] %v273
        %v275 = vrot.slane %v261, 2
        %v277 = vadd.f32 %v231, %v275
        %278 = vst [vmem:[#allocation2] sm:$0x8] %v277
        %v280 = vrot.slane %v239, 1
        %v282 = vmul.f32 %v239, %v280
        %283 = vst [vmem:[#allocation2 + $0x2] sm:$0x4] %v282
        %v284 = vsel %vm260, 1, 0
        %v285 = vcvt.s32.f32 %v284
        %v286 = vld [vmem:[%s228] sm:$0xff]
        %v287 = vld [vmem:[%s228 + $0x8] sm:$0xff]
        %v288 = vld [vmem:[%s228 + $0x10] sm:$0xff]
        %v289 = vld [vmem:[%s228 + $0x18] sm:$0xff]
        %v290 = vld [vmem:[%s228 + $0x20] sm:$0xff]
        %v291 = vld [vmem:[%s228 + $0x28] sm:$0xff]
        %v292 = vld [vmem:[%s228 + $0x30] sm:$0xff]
        %v293 = vld [vmem:[%s228 + $0x38] sm:$0xff]
        %v294 = vld [vmem:[%s228 + $0x40] sm:$0xff]
        %v295 = vld [vmem:[%s228 + $0x48] sm:$0xff]
        %v296 = vld [vmem:[%s228 + $0x50] sm:$0xff]
        %v297 = vld [vmem:[%s228 + $0x58] sm:$0xff]
        %v298 = vld [vmem:[%s228 + $0x60] sm:$0xff]
        %v299 = vld [vmem:[%s228 + $0x68] sm:$0xff]
        %v300 = vld [vmem:[%s228 + $0x70] sm:$0xff]
        %v301 = vld [vmem:[%s228 + $0x78] sm:$0xff]
        %v302 = vmax.f32 %v286, 0.0
        %v303 = vmax.f32 %v287, 0.0
        %v304 = vmax.f32 %v288, 0.0
        %v305 = vmax.f32 %v289, 0.0
        %v306 = vmax.f32 %v290, 0.0
        %v307 = vmax.f32 %v291, 0.0
        %v308 = vmax.f32 %v292, 0.0
        %v309 = vmax.f32 %v293, 0.0
        %v310 = vmax.f32 %v294, 0.0
        %v311 = vmax.f32 %v295, 0.0
        %v312 = vmax.f32 %v296, 0.0
        %v313 = vmax.f32 %v297, 0.0
        %v314 = vmax.f32 %v298, 0.0
        %v315 = vmax.f32 %v299, 0.0
        %v316 = vmax.f32 %v300, 0.0
        %v317 = vmax.f32 %v301, 0.0
        %v318 = vmin.f32 %v302, 64.0
        %v319 = vmin.f32 %v303, 64.0
        %v320 = vmin.f32 %v304, 64.0
        %v321 = vmin.f32 %v305, 64.0
        %v322 = vmin.f32 %v306, 64.0
        %v323 = vmin.f32 %v307, 64.0
        %v324 = vmin.f32 %v308, 64.0
        %v325 = vmin.f32 %v309, 64.0
        %v326 = vmin.f32 %v310, 64.0
        %v327 = vmin.f32 %v311, 64.0
        %v328 = vmin.f32 %v312, 64.0
        %v329 = vmin.f32 %v313, 64.0
        %v330 = vmin.f32 %v314, 64.0
        %v331 = vmin.f32 %v315, 64.0
        %v332 = vmin.f32 %v316, 64.0
        %v333 = vmin.f32 %v317, 64.0
        %v334 = vmul.f32 %v286, 65.0
        %v335 = vmul.f32 %v287, 65.0
        %v336 = vmul.f32 %v288, 65.0
        %v337 = vmul.f32 %v289, 65.0
        %v338 = vmul.f32 %v290, 65.0
        %v339 = vmul.f32 %v291, 65.0
        %v340 = vmul.f32 %v292, 65.0
        %v341 = vmul.f32 %v293, 65.0
        %v342 = vmul.f32 %v294, 65.0
        %v343 = vmul.f32 %v295, 65.0
        %v344 = vmul.f32 %v296, 65.0
        %v345 = vmul.f32 %v297, 65.0
        %v346 = vmul.f32 %v298, 65.0
        %v347 = vmul.f32 %v299, 65.0
        %v348 = vmul.f32 %v300, 65.0
        %v349 = vmul.f32 %v301, 65.0
        %366 = vrot.lane.b32.xlu0 %v334, 124
        %v367 = vpop.permute.xlu0 %366
        %368 = vrot.lane.b32.xlu0 %v335, 124
        %v369 = vpop.permute.xlu0 %368
        %370 = vrot.lane.b32.xlu0 %v336, 124
        %v371 = vpop.permute.xlu0 %370
        %372 = vrot.lane.b32.xlu0 %v337, 124
        %v373 = vpop.permute.xlu0 %372
        %374 = vrot.lane.b32.xlu0 %v338, 124
        %v375 = vpop.permute.xlu0 %374
        %376 = vrot.lane.b32.xlu0 %v339, 124
        %v377 = vpop.permute.xlu0 %376
        %378 = vrot.lane.b32.xlu0 %v340, 124
        %v379 = vpop.permute.xlu0 %378
        %380 = vrot.lane.b32.xlu0 %v341, 124
        %v381 = vpop.permute.xlu0 %380
        %382 = vrot.lane.b32.xlu0 %v342, 124
        %v383 = vpop.permute.xlu0 %382
        %384 = vrot.lane.b32.xlu0 %v343, 124
        %v385 = vpop.permute.xlu0 %384
        %386 = vrot.lane.b32.xlu0 %v344, 124
        %v387 = vpop.permute.xlu0 %386
        %388 = vrot.lane.b32.xlu0 %v345, 124
        %v389 = vpop.permute.xlu0 %388
        %390 = vrot.lane.b32.xlu0 %v346, 124
        %v391 = vpop.permute.xlu0 %390
        %392 = vrot.lane.b32.xlu0 %v347, 124
        %v393 = vpop.permute.xlu0 %392
        %394 = vrot.lane.b32.xlu0 %v348, 124
        %v395 = vpop.permute.xlu0 %394
        %396 = vrot.lane.b32.xlu0 %v349, 124
        %v397 = vpop.permute.xlu0 %396
        %v414 = vadd.f32 %v318, %v367
        %v415 = vadd.f32 %v319, %v369
        %v416 = vadd.f32 %v320, %v371
        %v417 = vadd.f32 %v321, %v373
        %v418 = vadd.f32 %v322, %v375
        %v419 = vadd.f32 %v323, %v377
        %v420 = vadd.f32 %v324, %v379
        %v421 = vadd.f32 %v325, %v381
        %v422 = vadd.f32 %v326, %v383
        %v423 = vadd.f32 %v327, %v385
        %v424 = vadd.f32 %v328, %v387
        %v425 = vadd.f32 %v329, %v389
        %v426 = vadd.f32 %v330, %v391
        %v427 = vadd.f32 %v331, %v393
        %v428 = vadd.f32 %v332, %v395
        %v429 = vadd.f32 %v333, %v397
        %430 = vrot.lane.b32.xlu0 %v334, 125
        %v431 = vpop.permute.xlu0 %430
        %432 = vrot.lane.b32.xlu0 %v335, 125
        %v433 = vpop.permute.xlu0 %432
        %434 = vrot.lane.b32.xlu0 %v336, 125
        %v435 = vpop.permute.xlu0 %434
        %436 = vrot.lane.b32.xlu0 %v337, 125
        %v437 = vpop.permute.xlu0 %436
        %438 = vrot.lane.b32.xlu0 %v338, 125
        %v439 = vpop.permute.xlu0 %438
        %440 = vrot.lane.b32.xlu0 %v339, 125
        %v441 = vpop.permute.xlu0 %440
        %442 = vrot.lane.b32.xlu0 %v340, 125
        %v443 = vpop.permute.xlu0 %442
        %444 = vrot.lane.b32.xlu0 %v341, 125
        %v445 = vpop.permute.xlu0 %444
        %446 = vrot.lane.b32.xlu0 %v342, 125
        %v447 = vpop.permute.xlu0 %446
        %448 = vrot.lane.b32.xlu0 %v343, 125
        %v449 = vpop.permute.xlu0 %448
        %450 = vrot.lane.b32.xlu0 %v344, 125
        %v451 = vpop.permute.xlu0 %450
        %452 = vrot.lane.b32.xlu0 %v345, 125
        %v453 = vpop.permute.xlu0 %452
        %454 = vrot.lane.b32.xlu0 %v346, 125
        %v455 = vpop.permute.xlu0 %454
        %456 = vrot.lane.b32.xlu0 %v347, 125
        %v457 = vpop.permute.xlu0 %456
        %458 = vrot.lane.b32.xlu0 %v348, 125
        %v459 = vpop.permute.xlu0 %458
        %460 = vrot.lane.b32.xlu0 %v349, 125
        %v461 = vpop.permute.xlu0 %460
        %v478 = vadd.f32 %v318, %v431
        %v479 = vadd.f32 %v319, %v433
        %v480 = vadd.f32 %v320, %v435
        %v481 = vadd.f32 %v321, %v437
        %v482 = vadd.f32 %v322, %v439
        %v483 = vadd.f32 %v323, %v441
        %v484 = vadd.f32 %v324, %v443
        %v485 = vadd.f32 %v325, %v445
        %v486 = vadd.f32 %v326, %v447
        %v487 = vadd.f32 %v327, %v449
        %v488 = vadd.f32 %v328, %v451
        %v489 = vadd.f32 %v329, %v453
        %v490 = vadd.f32 %v330, %v455
        %v491 = vadd.f32 %v331, %v457
        %v492 = vadd.f32 %v332, %v459
        %v493 = vadd.f32 %v333, %v461
        %494 = vrot.lane.b32.xlu0 %v334, 126
        %v495 = vpop.permute.xlu0 %494
        %496 = vrot.lane.b32.xlu0 %v335, 126
        %v497 = vpop.permute.xlu0 %496
        %498 = vrot.lane.b32.xlu0 %v336, 126
        %v499 = vpop.permute.xlu0 %498
        %500 = vrot.lane.b32.xlu0 %v337, 126
        %v501 = vpop.permute.xlu0 %500
        %502 = vrot.lane.b32.xlu0 %v338, 126
        %v503 = vpop.permute.xlu0 %502
        %504 = vrot.lane.b32.xlu0 %v339, 126
        %v505 = vpop.permute.xlu0 %504
        %506 = vrot.lane.b32.xlu0 %v340, 126
        %v507 = vpop.permute.xlu0 %506
        %508 = vrot.lane.b32.xlu0 %v341, 126
        %v509 = vpop.permute.xlu0 %508
        %510 = vrot.lane.b32.xlu0 %v342, 126
        %v511 = vpop.permute.xlu0 %510
        %512 = vrot.lane.b32.xlu0 %v343, 126
        %v513 = vpop.permute.xlu0 %512
        %514 = vrot.lane.b32.xlu0 %v344, 126
        %v515 = vpop.permute.xlu0 %514
        %516 = vrot.lane.b32.xlu0 %v345, 126
        %v517 = vpop.permute.xlu0 %516
        %518 = vrot.lane.b32.xlu0 %v346, 126
        %v519 = vpop.permute.xlu0 %518
        %520 = vrot.lane.b32.xlu0 %v347, 126
        %v521 = vpop.permute.xlu0 %520
        %522 = vrot.lane.b32.xlu0 %v348, 126
        %v523 = vpop.permute.xlu0 %522
        %524 = vrot.lane.b32.xlu0 %v349, 126
        %v525 = vpop.permute.xlu0 %524
        %v542 = vadd.f32 %v318, %v495
        %v543 = vadd.f32 %v319, %v497
        %v544 = vadd.f32 %v320, %v499
        %v545 = vadd.f32 %v321, %v501
        %v546 = vadd.f32 %v322, %v503
        %v547 = vadd.f32 %v323, %v505
        %v548 = vadd.f32 %v324, %v507
        %v549 = vadd.f32 %v325, %v509
        %v550 = vadd.f32 %v326, %v511
        %v551 = vadd.f32 %v327, %v513
        %v552 = vadd.f32 %v328, %v515
        %v553 = vadd.f32 %v329, %v517
        %v554 = vadd.f32 %v330, %v519
        %v555 = vadd.f32 %v331, %v521
        %v556 = vadd.f32 %v332, %v523
        %v557 = vadd.f32 %v333, %v525
        %558 = vrot.lane.b32.xlu0 %v334, 127
        %v559 = vpop.permute.xlu0 %558
        %560 = vrot.lane.b32.xlu0 %v335, 127
        %v561 = vpop.permute.xlu0 %560
        %562 = vrot.lane.b32.xlu0 %v336, 127
        %v563 = vpop.permute.xlu0 %562
        %564 = vrot.lane.b32.xlu0 %v337, 127
        %v565 = vpop.permute.xlu0 %564
        %566 = vrot.lane.b32.xlu0 %v338, 127
        %v567 = vpop.permute.xlu0 %566
        %568 = vrot.lane.b32.xlu0 %v339, 127
        %v569 = vpop.permute.xlu0 %568
        %570 = vrot.lane.b32.xlu0 %v340, 127
        %v571 = vpop.permute.xlu0 %570
        %572 = vrot.lane.b32.xlu0 %v341, 127
        %v573 = vpop.permute.xlu0 %572
        %574 = vrot.lane.b32.xlu0 %v342, 127
        %v575 = vpop.permute.xlu0 %574
        %576 = vrot.lane.b32.xlu0 %v343, 127
        %v577 = vpop.permute.xlu0 %576
        %578 = vrot.lane.b32.xlu0 %v344, 127
        %v579 = vpop.permute.xlu0 %578
        %580 = vrot.lane.b32.xlu0 %v345, 127
        %v581 = vpop.permute.xlu0 %580
        %582 = vrot.lane.b32.xlu0 %v346, 127
        %v583 = vpop.permute.xlu0 %582
        %584 = vrot.lane.b32.xlu0 %v347, 127
        %v585 = vpop.permute.xlu0 %584
        %586 = vrot.lane.b32.xlu0 %v348, 127
        %v587 = vpop.permute.xlu0 %586
        %588 = vrot.lane.b32.xlu0 %v349, 127
        %v589 = vpop.permute.xlu0 %588
        %v606 = vadd.f32 %v318, %v559
        %v607 = vadd.f32 %v319, %v561
        %v608 = vadd.f32 %v320, %v563
        %v609 = vadd.f32 %v321, %v565
        %v610 = vadd.f32 %v322, %v567
        %v611 = vadd.f32 %v323, %v569
        %v612 = vadd.f32 %v324, %v571
        %v613 = vadd.f32 %v325, %v573
        %v614 = vadd.f32 %v326, %v575
        %v615 = vadd.f32 %v327, %v577
        %v616 = vadd.f32 %v328, %v579
        %v617 = vadd.f32 %v329, %v581
        %v618 = vadd.f32 %v330, %v583
        %v619 = vadd.f32 %v331, %v585
        %v620 = vadd.f32 %v332, %v587
        %v621 = vadd.f32 %v333, %v589
        %638 = vrot.lane.b32.xlu0 %v318, 2
        %v639 = vpop.permute.xlu0 %638
        %640 = vrot.lane.b32.xlu0 %v319, 2
        %v641 = vpop.permute.xlu0 %640
        %642 = vrot.lane.b32.xlu0 %v320, 2
        %v643 = vpop.permute.xlu0 %642
        %644 = vrot.lane.b32.xlu0 %v321, 2
        %v645 = vpop.permute.xlu0 %644
        %646 = vrot.lane.b32.xlu0 %v322, 2
        %v647 = vpop.permute.xlu0 %646
        %648 = vrot.lane.b32.xlu0 %v323, 2
        %v649 = vpop.permute.xlu0 %648
        %650 = vrot.lane.b32.xlu0 %v324, 2
        %v651 = vpop.permute.xlu0 %650
        %652 = vrot.lane.b32.xlu0 %v325, 2
        %v653 = vpop.permute.xlu0 %652
        %654 = vrot.lane.b32.xlu0 %v326, 2
        %v655 = vpop.permute.xlu0 %654
        %656 = vrot.lane.b32.xlu0 %v327, 2
        %v657 = vpop.permute.xlu0 %656
        %658 = vrot.lane.b32.xlu0 %v328, 2
        %v659 = vpop.permute.xlu0 %658
        %660 = vrot.lane.b32.xlu0 %v329, 2
        %v661 = vpop.permute.xlu0 %660
        %662 = vrot.lane.b32.xlu0 %v330, 2
        %v663 = vpop.permute.xlu0 %662
        %664 = vrot.lane.b32.xlu0 %v331, 2
        %v665 = vpop.permute.xlu0 %664
        %666 = vrot.lane.b32.xlu0 %v332, 2
        %v667 = vpop.permute.xlu0 %666
        %668 = vrot.lane.b32.xlu0 %v333, 2
        %v669 = vpop.permute.xlu0 %668
        %v686 = vsub.f32 %v318, %v639
        %v687 = vsub.f32 %v319, %v641
        %v688 = vsub.f32 %v320, %v643
        %v689 = vsub.f32 %v321, %v645
        %v690 = vsub.f32 %v322, %v647
        %v691 = vsub.f32 %v323, %v649
        %v692 = vsub.f32 %v324, %v651
        %v693 = vsub.f32 %v325, %v653
        %v694 = vsub.f32 %v326, %v655
        %v695 = vsub.f32 %v327, %v657
        %v696 = vsub.f32 %v328, %v659
        %v697 = vsub.f32 %v329, %v661
        %v698 = vsub.f32 %v330, %v663
        %v699 = vsub.f32 %v331, %v665
        %v700 = vsub.f32 %v332, %v667
        %v701 = vsub.f32 %v333, %v669
        %718 = vrot.lane.b32.xlu0 %v686, 127
        %v719 = vpop.permute.xlu0 %718
        %720 = vrot.lane.b32.xlu0 %v687, 127
        %v721 = vpop.permute.xlu0 %720
        %722 = vrot.lane.b32.xlu0 %v688, 127
        %v723 = vpop.permute.xlu0 %722
        %724 = vrot.lane.b32.xlu0 %v689, 127
        %v725 = vpop.permute.xlu0 %724
        %726 = vrot.lane.b32.xlu0 %v690, 127
        %v727 = vpop.permute.xlu0 %726
        %728 = vrot.lane.b32.xlu0 %v691, 127
        %v729 = vpop.permute.xlu0 %728
        %730 = vrot.lane.b32.xlu0 %v692, 127
        %v731 = vpop.permute.xlu0 %730
        %732 = vrot.lane.b32.xlu0 %v693, 127
        %v733 = vpop.permute.xlu0 %732
        %734 = vrot.lane.b32.xlu0 %v694, 127
        %v735 = vpop.permute.xlu0 %734
        %736 = vrot.lane.b32.xlu0 %v695, 127
        %v737 = vpop.permute.xlu0 %736
        %738 = vrot.lane.b32.xlu0 %v696, 127
        %v739 = vpop.permute.xlu0 %738
        %740 = vrot.lane.b32.xlu0 %v697, 127
        %v741 = vpop.permute.xlu0 %740
        %742 = vrot.lane.b32.xlu0 %v698, 127
        %v743 = vpop.permute.xlu0 %742
        %744 = vrot.lane.b32.xlu0 %v699, 127
        %v745 = vpop.permute.xlu0 %744
        %746 = vrot.lane.b32.xlu0 %v700, 127
        %v747 = vpop.permute.xlu0 %746
        %748 = vrot.lane.b32.xlu0 %v701, 127
        %v749 = vpop.permute.xlu0 %748
        %v766 = vmul.f32 %v686, %v719
        %v767 = vmul.f32 %v687, %v721
        %v768 = vmul.f32 %v688, %v723
        %v769 = vmul.f32 %v689, %v725
        %v770 = vmul.f32 %v690, %v727
        %v771 = vmul.f32 %v691, %v729
        %v772 = vmul.f32 %v692, %v731
        %v773 = vmul.f32 %v693, %v733
        %v774 = vmul.f32 %v694, %v735
        %v775 = vmul.f32 %v695, %v737
        %v776 = vmul.f32 %v696, %v739
        %v777 = vmul.f32 %v697, %v741
        %v778 = vmul.f32 %v698, %v743
        %v779 = vmul.f32 %v699, %v745
        %v780 = vmul.f32 %v700, %v747
        %v781 = vmul.f32 %v701, %v749
        %v782 = vld [vmem:[#allocation2] sm:$0x1]
        %v783 = vld [vmem:[#allocation2 + $0x1] sm:$0x1]
        %v784 = vld [vmem:[#allocation2 + $0x2] sm:$0x1]
        %v785 = vld [vmem:[#allocation2 + $0x3] sm:$0x1]
        %v786 = vld [vmem:[#allocation2 + $0x4] sm:$0x1]
        %788 = vset.pattern.permute.xlu0 2
        %789 = vperm.xlu0 %788, %v542
        %v790 = vpop.permute.xlu0 %789
        %793 = vset.pattern.permute.xlu0 2
        %794 = vperm.xlu0 %793, %v543
        %v795 = vpop.permute.xlu0 %794
        %798 = vset.pattern.permute.xlu0 2
        %799 = vperm.xlu0 %798, %v544
        %v800 = vpop.permute.xlu0 %799
        %803 = vset.pattern.permute.xlu0 2
        %804 = vperm.xlu0 %803, %v545
        %v805 = vpop.permute.xlu0 %804
        %808 = vset.pattern.permute.xlu0 2
        %809 = vperm.xlu0 %808, %v546
        %v810 = vpop.permute.xlu0 %809
        %813 = vset.pattern.permute.xlu0 2
        %814 = vperm.xlu0 %813, %v547
        %v815 = vpop.permute.xlu0 %814
        %818 = vset.pattern.permute.xlu0 2
        %819 = vperm.xlu0 %818, %v548
        %v820 = vpop.permute.xlu0 %819
        %823 = vset.pattern.permute.xlu0 2
        %824 = vperm.xlu0 %823, %v549
        %v825 = vpop.permute.xlu0 %824
        %828 = vset.pattern.permute.xlu0 2
        %829 = vperm.xlu0 %828, %v550
        %v830 = vpop.permute.xlu0 %829
        %833 = vset.pattern.permute.xlu0 2
        %834 = vperm.xlu0 %833, %v551
        %v835 = vpop.permute.xlu0 %834
        %838 = vset.pattern.permute.xlu0 2
        %839 = vperm.xlu0 %838, %v552
        %v840 = vpop.permute.xlu0 %839
        %843 = vset.pattern.permute.xlu0 2
        %844 = vperm.xlu0 %843, %v553
        %v845 = vpop.permute.xlu0 %844
        %848 = vset.pattern.permute.xlu0 2
        %849 = vperm.xlu0 %848, %v554
        %v850 = vpop.permute.xlu0 %849
        %853 = vset.pattern.permute.xlu0 2
        %854 = vperm.xlu0 %853, %v555
        %v855 = vpop.permute.xlu0 %854
        %858 = vset.pattern.permute.xlu0 2
        %859 = vperm.xlu0 %858, %v556
        %v860 = vpop.permute.xlu0 %859
        %863 = vset.pattern.permute.xlu0 2
        %864 = vperm.xlu0 %863, %v557
        %v865 = vpop.permute.xlu0 %864
        %v867 = vlaneseq
        %v868 = vshrl.u32 %v867, 7
        %v869 = vsub.s32 0, %v868
        %v870 = vrot.slane %v784, %v869
        %v871 = vmin.f32 %v790, %v870
        %v872 = vmin.f32 %v795, %v870
        %v873 = vmin.f32 %v800, %v870
        %v874 = vmin.f32 %v805, %v870
        %v875 = vmin.f32 %v810, %v870
        %v876 = vmin.f32 %v815, %v870
        %v877 = vmin.f32 %v820, %v870
        %v878 = vmin.f32 %v825, %v870
        %v879 = vmin.f32 %v830, %v870
        %v880 = vmin.f32 %v835, %v870
        %v881 = vmin.f32 %v840, %v870
        %v882 = vmin.f32 %v845, %v870
        %v883 = vmin.f32 %v850, %v870
        %v884 = vmin.f32 %v855, %v870
        %v885 = vmin.f32 %v860, %v870
        %v886 = vmin.f32 %v865, %v870
        %888 = vset.pattern.permute.xlu0 0
        %889 = vperm.xlu0 %888, %v414
        %v890 = vpop.permute.xlu0 %889
        %893 = vset.pattern.permute.xlu0 0
        %894 = vperm.xlu0 %893, %v415
        %v895 = vpop.permute.xlu0 %894
        %898 = vset.pattern.permute.xlu0 0
        %899 = vperm.xlu0 %898, %v416
        %v900 = vpop.permute.xlu0 %899
        %903 = vset.pattern.permute.xlu0 0
        %904 = vperm.xlu0 %903, %v417
        %v905 = vpop.permute.xlu0 %904
        %908 = vset.pattern.permute.xlu0 0
        %909 = vperm.xlu0 %908, %v418
        %v910 = vpop.permute.xlu0 %909
        %913 = vset.pattern.permute.xlu0 0
        %914 = vperm.xlu0 %913, %v419
        %v915 = vpop.permute.xlu0 %914
        %918 = vset.pattern.permute.xlu0 0
        %919 = vperm.xlu0 %918, %v420
        %v920 = vpop.permute.xlu0 %919
        %923 = vset.pattern.permute.xlu0 0
        %924 = vperm.xlu0 %923, %v421
        %v925 = vpop.permute.xlu0 %924
        %928 = vset.pattern.permute.xlu0 0
        %929 = vperm.xlu0 %928, %v422
        %v930 = vpop.permute.xlu0 %929
        %933 = vset.pattern.permute.xlu0 0
        %934 = vperm.xlu0 %933, %v423
        %v935 = vpop.permute.xlu0 %934
        %938 = vset.pattern.permute.xlu0 0
        %939 = vperm.xlu0 %938, %v424
        %v940 = vpop.permute.xlu0 %939
        %943 = vset.pattern.permute.xlu0 0
        %944 = vperm.xlu0 %943, %v425
        %v945 = vpop.permute.xlu0 %944
        %948 = vset.pattern.permute.xlu0 0
        %949 = vperm.xlu0 %948, %v426
        %v950 = vpop.permute.xlu0 %949
        %953 = vset.pattern.permute.xlu0 0
        %954 = vperm.xlu0 %953, %v427
        %v955 = vpop.permute.xlu0 %954
        %958 = vset.pattern.permute.xlu0 0
        %959 = vperm.xlu0 %958, %v428
        %v960 = vpop.permute.xlu0 %959
        %963 = vset.pattern.permute.xlu0 0
        %964 = vperm.xlu0 %963, %v429
        %v965 = vpop.permute.xlu0 %964
        %v967 = vlaneseq
        %v968 = vshrl.u32 %v967, 7
        %v969 = vsub.s32 0, %v968
        %v970 = vrot.slane %v782, %v969
        %v971 = vmax.f32 %v890, %v970
        %v972 = vmax.f32 %v895, %v970
        %v973 = vmax.f32 %v900, %v970
        %v974 = vmax.f32 %v905, %v970
        %v975 = vmax.f32 %v910, %v970
        %v976 = vmax.f32 %v915, %v970
        %v977 = vmax.f32 %v920, %v970
        %v978 = vmax.f32 %v925, %v970
        %v979 = vmax.f32 %v930, %v970
        %v980 = vmax.f32 %v935, %v970
        %v981 = vmax.f32 %v940, %v970
        %v982 = vmax.f32 %v945, %v970
        %v983 = vmax.f32 %v950, %v970
        %v984 = vmax.f32 %v955, %v970
        %v985 = vmax.f32 %v960, %v970
        %v986 = vmax.f32 %v965, %v970
        %v987 = vsub.f32 %v871, %v971
        %v988 = vsub.f32 %v872, %v972
        %v989 = vsub.f32 %v873, %v973
        %v990 = vsub.f32 %v874, %v974
        %v991 = vsub.f32 %v875, %v975
        %v992 = vsub.f32 %v876, %v976
        %v993 = vsub.f32 %v877, %v977
        %v994 = vsub.f32 %v878, %v978
        %v995 = vsub.f32 %v879, %v979
        %v996 = vsub.f32 %v880, %v980
        %v997 = vsub.f32 %v881, %v981
        %v998 = vsub.f32 %v882, %v982
        %v999 = vsub.f32 %v883, %v983
        %v1000 = vsub.f32 %v884, %v984
        %v1001 = vsub.f32 %v885, %v985
        %v1002 = vsub.f32 %v886, %v986
        %v1003 = vmax.f32 %v987, 0.0
        %v1004 = vmax.f32 %v988, 0.0
        %v1005 = vmax.f32 %v989, 0.0
        %v1006 = vmax.f32 %v990, 0.0
        %v1007 = vmax.f32 %v991, 0.0
        %v1008 = vmax.f32 %v992, 0.0
        %v1009 = vmax.f32 %v993, 0.0
        %v1010 = vmax.f32 %v994, 0.0
        %v1011 = vmax.f32 %v995, 0.0
        %v1012 = vmax.f32 %v996, 0.0
        %v1013 = vmax.f32 %v997, 0.0
        %v1014 = vmax.f32 %v998, 0.0
        %v1015 = vmax.f32 %v999, 0.0
        %v1016 = vmax.f32 %v1000, 0.0
        %v1017 = vmax.f32 %v1001, 0.0
        %v1018 = vmax.f32 %v1002, 0.0
        %1020 = vset.pattern.permute.xlu0 3
        %1021 = vperm.xlu0 %1020, %v606
        %v1022 = vpop.permute.xlu0 %1021
        %1025 = vset.pattern.permute.xlu0 3
        %1026 = vperm.xlu0 %1025, %v607
        %v1027 = vpop.permute.xlu0 %1026
        %1030 = vset.pattern.permute.xlu0 3
        %1031 = vperm.xlu0 %1030, %v608
        %v1032 = vpop.permute.xlu0 %1031
        %1035 = vset.pattern.permute.xlu0 3
        %1036 = vperm.xlu0 %1035, %v609
        %v1037 = vpop.permute.xlu0 %1036
        %1040 = vset.pattern.permute.xlu0 3
        %1041 = vperm.xlu0 %1040, %v610
        %v1042 = vpop.permute.xlu0 %1041
        %1045 = vset.pattern.permute.xlu0 3
        %1046 = vperm.xlu0 %1045, %v611
        %v1047 = vpop.permute.xlu0 %1046
        %1050 = vset.pattern.permute.xlu0 3
        %1051 = vperm.xlu0 %1050, %v612
        %v1052 = vpop.permute.xlu0 %1051
        %1055 = vset.pattern.permute.xlu0 3
        %1056 = vperm.xlu0 %1055, %v613
        %v1057 = vpop.permute.xlu0 %1056
        %1060 = vset.pattern.permute.xlu0 3
        %1061 = vperm.xlu0 %1060, %v614
        %v1062 = vpop.permute.xlu0 %1061
        %1065 = vset.pattern.permute.xlu0 3
        %1066 = vperm.xlu0 %1065, %v615
        %v1067 = vpop.permute.xlu0 %1066
        %1070 = vset.pattern.permute.xlu0 3
        %1071 = vperm.xlu0 %1070, %v616
        %v1072 = vpop.permute.xlu0 %1071
        %1075 = vset.pattern.permute.xlu0 3
        %1076 = vperm.xlu0 %1075, %v617
        %v1077 = vpop.permute.xlu0 %1076
        %1080 = vset.pattern.permute.xlu0 3
        %1081 = vperm.xlu0 %1080, %v618
        %v1082 = vpop.permute.xlu0 %1081
        %1085 = vset.pattern.permute.xlu0 3
        %1086 = vperm.xlu0 %1085, %v619
        %v1087 = vpop.permute.xlu0 %1086
        %1090 = vset.pattern.permute.xlu0 3
        %1091 = vperm.xlu0 %1090, %v620
        %v1092 = vpop.permute.xlu0 %1091
        %1095 = vset.pattern.permute.xlu0 3
        %1096 = vperm.xlu0 %1095, %v621
        %v1097 = vpop.permute.xlu0 %1096
        %v1099 = vlaneseq
        %v1100 = vshrl.u32 %v1099, 7
        %v1101 = vsub.s32 0, %v1100
        %v1102 = vrot.slane %v785, %v1101
        %v1103 = vmin.f32 %v1022, %v1102
        %v1104 = vmin.f32 %v1027, %v1102
        %v1105 = vmin.f32 %v1032, %v1102
        %v1106 = vmin.f32 %v1037, %v1102
        %v1107 = vmin.f32 %v1042, %v1102
        %v1108 = vmin.f32 %v1047, %v1102
        %v1109 = vmin.f32 %v1052, %v1102
        %v1110 = vmin.f32 %v1057, %v1102
        %v1111 = vmin.f32 %v1062, %v1102
        %v1112 = vmin.f32 %v1067, %v1102
        %v1113 = vmin.f32 %v1072, %v1102
        %v1114 = vmin.f32 %v1077, %v1102
        %v1115 = vmin.f32 %v1082, %v1102
        %v1116 = vmin.f32 %v1087, %v1102
        %v1117 = vmin.f32 %v1092, %v1102
        %v1118 = vmin.f32 %v1097, %v1102
        %1120 = vset.pattern.permute.xlu0 1
        %1121 = vperm.xlu0 %1120, %v478
        %v1122 = vpop.permute.xlu0 %1121
        %1125 = vset.pattern.permute.xlu0 1
        %1126 = vperm.xlu0 %1125, %v479
        %v1127 = vpop.permute.xlu0 %1126
        %1130 = vset.pattern.permute.xlu0 1
        %1131 = vperm.xlu0 %1130, %v480
        %v1132 = vpop.permute.xlu0 %1131
        %1135 = vset.pattern.permute.xlu0 1
        %1136 = vperm.xlu0 %1135, %v481
        %v1137 = vpop.permute.xlu0 %1136
        %1140 = vset.pattern.permute.xlu0 1
        %1141 = vperm.xlu0 %1140, %v482
        %v1142 = vpop.permute.xlu0 %1141
        %1145 = vset.pattern.permute.xlu0 1
        %1146 = vperm.xlu0 %1145, %v483
        %v1147 = vpop.permute.xlu0 %1146
        %1150 = vset.pattern.permute.xlu0 1
        %1151 = vperm.xlu0 %1150, %v484
        %v1152 = vpop.permute.xlu0 %1151
        %1155 = vset.pattern.permute.xlu0 1
        %1156 = vperm.xlu0 %1155, %v485
        %v1157 = vpop.permute.xlu0 %1156
        %1160 = vset.pattern.permute.xlu0 1
        %1161 = vperm.xlu0 %1160, %v486
        %v1162 = vpop.permute.xlu0 %1161
        %1165 = vset.pattern.permute.xlu0 1
        %1166 = vperm.xlu0 %1165, %v487
        %v1167 = vpop.permute.xlu0 %1166
        %1170 = vset.pattern.permute.xlu0 1
        %1171 = vperm.xlu0 %1170, %v488
        %v1172 = vpop.permute.xlu0 %1171
        %1175 = vset.pattern.permute.xlu0 1
        %1176 = vperm.xlu0 %1175, %v489
        %v1177 = vpop.permute.xlu0 %1176
        %1180 = vset.pattern.permute.xlu0 1
        %1181 = vperm.xlu0 %1180, %v490
        %v1182 = vpop.permute.xlu0 %1181
        %1185 = vset.pattern.permute.xlu0 1
        %1186 = vperm.xlu0 %1185, %v491
        %v1187 = vpop.permute.xlu0 %1186
        %1190 = vset.pattern.permute.xlu0 1
        %1191 = vperm.xlu0 %1190, %v492
        %v1192 = vpop.permute.xlu0 %1191
        %1195 = vset.pattern.permute.xlu0 1
        %1196 = vperm.xlu0 %1195, %v493
        %v1197 = vpop.permute.xlu0 %1196
        %v1199 = vlaneseq
        %v1200 = vshrl.u32 %v1199, 7
        %v1201 = vsub.s32 0, %v1200
        %v1202 = vrot.slane %v783, %v1201
        %v1203 = vmax.f32 %v1122, %v1202
        %v1204 = vmax.f32 %v1127, %v1202
        %v1205 = vmax.f32 %v1132, %v1202
        %v1206 = vmax.f32 %v1137, %v1202
        %v1207 = vmax.f32 %v1142, %v1202
        %v1208 = vmax.f32 %v1147, %v1202
        %v1209 = vmax.f32 %v1152, %v1202
        %v1210 = vmax.f32 %v1157, %v1202
        %v1211 = vmax.f32 %v1162, %v1202
        %v1212 = vmax.f32 %v1167, %v1202
        %v1213 = vmax.f32 %v1172, %v1202
        %v1214 = vmax.f32 %v1177, %v1202
        %v1215 = vmax.f32 %v1182, %v1202
        %v1216 = vmax.f32 %v1187, %v1202
        %v1217 = vmax.f32 %v1192, %v1202
        %v1218 = vmax.f32 %v1197, %v1202
        %v1219 = vsub.f32 %v1103, %v1203
        %v1220 = vsub.f32 %v1104, %v1204
        %v1221 = vsub.f32 %v1105, %v1205
        %v1222 = vsub.f32 %v1106, %v1206
        %v1223 = vsub.f32 %v1107, %v1207
        %v1224 = vsub.f32 %v1108, %v1208
        %v1225 = vsub.f32 %v1109, %v1209
        %v1226 = vsub.f32 %v1110, %v1210
        %v1227 = vsub.f32 %v1111, %v1211
        %v1228 = vsub.f32 %v1112, %v1212
        %v1229 = vsub.f32 %v1113, %v1213
        %v1230 = vsub.f32 %v1114, %v1214
        %v1231 = vsub.f32 %v1115, %v1215
        %v1232 = vsub.f32 %v1116, %v1216
        %v1233 = vsub.f32 %v1117, %v1217
        %v1234 = vsub.f32 %v1118, %v1218
        %v1235 = vmax.f32 %v1219, 0.0
        %v1236 = vmax.f32 %v1220, 0.0
        %v1237 = vmax.f32 %v1221, 0.0
        %v1238 = vmax.f32 %v1222, 0.0
        %v1239 = vmax.f32 %v1223, 0.0
        %v1240 = vmax.f32 %v1224, 0.0
        %v1241 = vmax.f32 %v1225, 0.0
        %v1242 = vmax.f32 %v1226, 0.0
        %v1243 = vmax.f32 %v1227, 0.0
        %v1244 = vmax.f32 %v1228, 0.0
        %v1245 = vmax.f32 %v1229, 0.0
        %v1246 = vmax.f32 %v1230, 0.0
        %v1247 = vmax.f32 %v1231, 0.0
        %v1248 = vmax.f32 %v1232, 0.0
        %v1249 = vmax.f32 %v1233, 0.0
        %v1250 = vmax.f32 %v1234, 0.0
        %v1251 = vmul.f32 %v1003, %v1235
        %v1252 = vmul.f32 %v1004, %v1236
        %v1253 = vmul.f32 %v1005, %v1237
        %v1254 = vmul.f32 %v1006, %v1238
        %v1255 = vmul.f32 %v1007, %v1239
        %v1256 = vmul.f32 %v1008, %v1240
        %v1257 = vmul.f32 %v1009, %v1241
        %v1258 = vmul.f32 %v1010, %v1242
        %v1259 = vmul.f32 %v1011, %v1243
        %v1260 = vmul.f32 %v1012, %v1244
        %v1261 = vmul.f32 %v1013, %v1245
        %v1262 = vmul.f32 %v1014, %v1246
        %v1263 = vmul.f32 %v1015, %v1247
        %v1264 = vmul.f32 %v1016, %v1248
        %v1265 = vmul.f32 %v1017, %v1249
        %v1266 = vmul.f32 %v1018, %v1250
        %1268 = vset.pattern.permute.xlu0 2
        %1269 = vperm.xlu0 %1268, %v766
        %v1270 = vpop.permute.xlu0 %1269
        %1273 = vset.pattern.permute.xlu0 2
        %1274 = vperm.xlu0 %1273, %v767
        %v1275 = vpop.permute.xlu0 %1274
        %1278 = vset.pattern.permute.xlu0 2
        %1279 = vperm.xlu0 %1278, %v768
        %v1280 = vpop.permute.xlu0 %1279
        %1283 = vset.pattern.permute.xlu0 2
        %1284 = vperm.xlu0 %1283, %v769
        %v1285 = vpop.permute.xlu0 %1284
        %1288 = vset.pattern.permute.xlu0 2
        %1289 = vperm.xlu0 %1288, %v770
        %v1290 = vpop.permute.xlu0 %1289
        %1293 = vset.pattern.permute.xlu0 2
        %1294 = vperm.xlu0 %1293, %v771
        %v1295 = vpop.permute.xlu0 %1294
        %1298 = vset.pattern.permute.xlu0 2
        %1299 = vperm.xlu0 %1298, %v772
        %v1300 = vpop.permute.xlu0 %1299
        %1303 = vset.pattern.permute.xlu0 2
        %1304 = vperm.xlu0 %1303, %v773
        %v1305 = vpop.permute.xlu0 %1304
        %1308 = vset.pattern.permute.xlu0 2
        %1309 = vperm.xlu0 %1308, %v774
        %v1310 = vpop.permute.xlu0 %1309
        %1313 = vset.pattern.permute.xlu0 2
        %1314 = vperm.xlu0 %1313, %v775
        %v1315 = vpop.permute.xlu0 %1314
        %1318 = vset.pattern.permute.xlu0 2
        %1319 = vperm.xlu0 %1318, %v776
        %v1320 = vpop.permute.xlu0 %1319
        %1323 = vset.pattern.permute.xlu0 2
        %1324 = vperm.xlu0 %1323, %v777
        %v1325 = vpop.permute.xlu0 %1324
        %1328 = vset.pattern.permute.xlu0 2
        %1329 = vperm.xlu0 %1328, %v778
        %v1330 = vpop.permute.xlu0 %1329
        %1333 = vset.pattern.permute.xlu0 2
        %1334 = vperm.xlu0 %1333, %v779
        %v1335 = vpop.permute.xlu0 %1334
        %1338 = vset.pattern.permute.xlu0 2
        %1339 = vperm.xlu0 %1338, %v780
        %v1340 = vpop.permute.xlu0 %1339
        %1343 = vset.pattern.permute.xlu0 2
        %1344 = vperm.xlu0 %1343, %v781
        %v1345 = vpop.permute.xlu0 %1344
        %v1347 = vlaneseq
        %v1348 = vshrl.u32 %v1347, 7
        %v1349 = vsub.s32 0, %v1348
        %v1350 = vrot.slane %v786, %v1349
        %v1351 = vadd.f32 %v1270, %v1350
        %v1352 = vadd.f32 %v1275, %v1350
        %v1353 = vadd.f32 %v1280, %v1350
        %v1354 = vadd.f32 %v1285, %v1350
        %v1355 = vadd.f32 %v1290, %v1350
        %v1356 = vadd.f32 %v1295, %v1350
        %v1357 = vadd.f32 %v1300, %v1350
        %v1358 = vadd.f32 %v1305, %v1350
        %v1359 = vadd.f32 %v1310, %v1350
        %v1360 = vadd.f32 %v1315, %v1350
        %v1361 = vadd.f32 %v1320, %v1350
        %v1362 = vadd.f32 %v1325, %v1350
        %v1363 = vadd.f32 %v1330, %v1350
        %v1364 = vadd.f32 %v1335, %v1350
        %v1365 = vadd.f32 %v1340, %v1350
        %v1366 = vadd.f32 %v1345, %v1350
        %v1367 = vsub.f32 %v1351, %v1251
        %v1368 = vsub.f32 %v1352, %v1252
        %v1369 = vsub.f32 %v1353, %v1253
        %v1370 = vsub.f32 %v1354, %v1254
        %v1371 = vsub.f32 %v1355, %v1255
        %v1372 = vsub.f32 %v1356, %v1256
        %v1373 = vsub.f32 %v1357, %v1257
        %v1374 = vsub.f32 %v1358, %v1258
        %v1375 = vsub.f32 %v1359, %v1259
        %v1376 = vsub.f32 %v1360, %v1260
        %v1377 = vsub.f32 %v1361, %v1261
        %v1378 = vsub.f32 %v1362, %v1262
        %v1379 = vsub.f32 %v1363, %v1263
        %v1380 = vsub.f32 %v1364, %v1264
        %v1381 = vsub.f32 %v1365, %v1265
        %v1382 = vsub.f32 %v1366, %v1266
        %v1383 = vlaneseq
        %v1384 = vshrl.u32 %v1383, 7
        %v1385 = vadd.s32 %v1384, 8
        %v1386 = vadd.s32 %v1384, 16
        %v1387 = vadd.s32 %v1384, 24
        %v1388 = vadd.s32 %v1384, 32
        %v1389 = vadd.s32 %v1384, 40
        %v1390 = vadd.s32 %v1384, 48
        %v1391 = vadd.s32 %v1384, 56
        %v1392 = vadd.s32 %v1384, 64
        %v1393 = vadd.s32 %v1384, 72
        %v1394 = vadd.s32 %v1384, 80
        %v1395 = vadd.s32 %v1384, 88
        %v1396 = vadd.s32 %v1384, 96
        %v1397 = vadd.s32 %v1384, 104
        %v1398 = vadd.s32 %v1384, 112
        %v1399 = vadd.s32 %v1384, 120
        %v1400 = vmul.f32 %v1367, 0.7
        %v1401 = vmul.f32 %v1368, 0.7
        %v1402 = vmul.f32 %v1369, 0.7
        %v1403 = vmul.f32 %v1370, 0.7
        %v1404 = vmul.f32 %v1371, 0.7
        %v1405 = vmul.f32 %v1372, 0.7
        %v1406 = vmul.f32 %v1373, 0.7
        %v1407 = vmul.f32 %v1374, 0.7
        %v1408 = vmul.f32 %v1375, 0.7
        %v1409 = vmul.f32 %v1376, 0.7
        %v1410 = vmul.f32 %v1377, 0.7
        %v1411 = vmul.f32 %v1378, 0.7
        %v1412 = vmul.f32 %v1379, 0.7
        %v1413 = vmul.f32 %v1380, 0.7
        %v1414 = vmul.f32 %v1381, 0.7
        %v1415 = vmul.f32 %v1382, 0.7
        %vm1416 = vcmp.gt.f32.partialorder %v1251, %v1400
        %vm1417 = vcmp.gt.f32.partialorder %v1252, %v1401
        %vm1418 = vcmp.gt.f32.partialorder %v1253, %v1402
        %vm1419 = vcmp.gt.f32.partialorder %v1254, %v1403
        %vm1420 = vcmp.gt.f32.partialorder %v1255, %v1404
        %vm1421 = vcmp.gt.f32.partialorder %v1256, %v1405
        %vm1422 = vcmp.gt.f32.partialorder %v1257, %v1406
        %vm1423 = vcmp.gt.f32.partialorder %v1258, %v1407
        %vm1424 = vcmp.gt.f32.partialorder %v1259, %v1408
        %vm1425 = vcmp.gt.f32.partialorder %v1260, %v1409
        %vm1426 = vcmp.gt.f32.partialorder %v1261, %v1410
        %vm1427 = vcmp.gt.f32.partialorder %v1262, %v1411
        %vm1428 = vcmp.gt.f32.partialorder %v1263, %v1412
        %vm1429 = vcmp.gt.f32.partialorder %v1264, %v1413
        %vm1430 = vcmp.gt.f32.partialorder %v1265, %v1414
        %vm1431 = vcmp.gt.f32.partialorder %v1266, %v1415
        %vm1432 = vcmp.gt.s32.totalorder %v248, %v1384
        %vm1433 = vcmp.gt.s32.totalorder %v248, %v1385
        %vm1434 = vcmp.gt.s32.totalorder %v248, %v1386
        %vm1435 = vcmp.gt.s32.totalorder %v248, %v1387
        %vm1436 = vcmp.gt.s32.totalorder %v248, %v1388
        %vm1437 = vcmp.gt.s32.totalorder %v248, %v1389
        %vm1438 = vcmp.gt.s32.totalorder %v248, %v1390
        %vm1439 = vcmp.gt.s32.totalorder %v248, %v1391
        %vm1440 = vcmp.gt.s32.totalorder %v248, %v1392
        %vm1441 = vcmp.gt.s32.totalorder %v248, %v1393
        %vm1442 = vcmp.gt.s32.totalorder %v248, %v1394
        %vm1443 = vcmp.gt.s32.totalorder %v248, %v1395
        %vm1444 = vcmp.gt.s32.totalorder %v248, %v1396
        %vm1445 = vcmp.gt.s32.totalorder %v248, %v1397
        %vm1446 = vcmp.gt.s32.totalorder %v248, %v1398
        %vm1447 = vcmp.gt.s32.totalorder %v248, %v1399
        %vm1448 = vmand %vm1416, %vm1432
        %vm1449 = vmand %vm1417, %vm1433
        %vm1450 = vmand %vm1418, %vm1434
        %vm1451 = vmand %vm1419, %vm1435
        %vm1452 = vmand %vm1420, %vm1436
        %vm1453 = vmand %vm1421, %vm1437
        %vm1454 = vmand %vm1422, %vm1438
        %vm1455 = vmand %vm1423, %vm1439
        %vm1456 = vmand %vm1424, %vm1440
        %vm1457 = vmand %vm1425, %vm1441
        %vm1458 = vmand %vm1426, %vm1442
        %vm1459 = vmand %vm1427, %vm1443
        %vm1460 = vmand %vm1428, %vm1444
        %vm1461 = vmand %vm1429, %vm1445
        %vm1462 = vmand %vm1430, %vm1446
        %vm1463 = vmand %vm1431, %vm1447
        %v1464 = vsel %vm1448, 1, 0
        %v1465 = vsel %vm1449, 1, 0
        %v1466 = vsel %vm1450, 1, 0
        %v1467 = vsel %vm1451, 1, 0
        %v1468 = vsel %vm1452, 1, 0
        %v1469 = vsel %vm1453, 1, 0
        %v1470 = vsel %vm1454, 1, 0
        %v1471 = vsel %vm1455, 1, 0
        %v1472 = vsel %vm1456, 1, 0
        %v1473 = vsel %vm1457, 1, 0
        %v1474 = vsel %vm1458, 1, 0
        %v1475 = vsel %vm1459, 1, 0
        %v1476 = vsel %vm1460, 1, 0
        %v1477 = vsel %vm1461, 1, 0
        %v1478 = vsel %vm1462, 1, 0
        %v1479 = vsel %vm1463, 1, 0
        %v1480 = vcvt.s32.f32 %v1464
        %v1481 = vcvt.s32.f32 %v1465
        %v1482 = vcvt.s32.f32 %v1466
        %v1483 = vcvt.s32.f32 %v1467
        %v1484 = vcvt.s32.f32 %v1468
        %v1485 = vcvt.s32.f32 %v1469
        %v1486 = vcvt.s32.f32 %v1470
        %v1487 = vcvt.s32.f32 %v1471
        %v1488 = vcvt.s32.f32 %v1472
        %v1489 = vcvt.s32.f32 %v1473
        %v1490 = vcvt.s32.f32 %v1474
        %v1491 = vcvt.s32.f32 %v1475
        %v1492 = vcvt.s32.f32 %v1476
        %v1493 = vcvt.s32.f32 %v1477
        %v1494 = vcvt.s32.f32 %v1478
        %v1495 = vcvt.s32.f32 %v1479
        %1496 = vst [vmem:[#allocation3] sm:$0xff] %v1480
        %1497 = vst [vmem:[#allocation3 + $0x8] sm:$0xff] %v1481
        %1498 = vst [vmem:[#allocation3 + $0x10] sm:$0xff] %v1482
        %1499 = vst [vmem:[#allocation3 + $0x18] sm:$0xff] %v1483
        %1500 = vst [vmem:[#allocation3 + $0x20] sm:$0xff] %v1484
        %1501 = vst [vmem:[#allocation3 + $0x28] sm:$0xff] %v1485
        %1502 = vst [vmem:[#allocation3 + $0x30] sm:$0xff] %v1486
        %1503 = vst [vmem:[#allocation3 + $0x38] sm:$0xff] %v1487
        %1504 = vst [vmem:[#allocation3 + $0x40] sm:$0xff] %v1488
        %1505 = vst [vmem:[#allocation3 + $0x48] sm:$0xff] %v1489
        %1506 = vst [vmem:[#allocation3 + $0x50] sm:$0xff] %v1490
        %1507 = vst [vmem:[#allocation3 + $0x58] sm:$0xff] %v1491
        %1508 = vst [vmem:[#allocation3 + $0x60] sm:$0xff] %v1492
        %1509 = vst [vmem:[#allocation3 + $0x68] sm:$0xff] %v1493
        %1510 = vst [vmem:[#allocation3 + $0x70] sm:$0xff] %v1494
        %1511 = vst [vmem:[#allocation3 + $0x78] sm:$0xff] %v1495
        %v1513 = vrot.slane %v285, 2
        loop: start=0, step=1, limit=128
        $region29: #{tpu_custom_call.1} parent=27 // loop_pre_header
          _
        $region30: #{tpu_custom_call.1} parent=27 // loop_header
          %s1516 = sphi 0, %s1520
          %p1517 = scmp.ge.s32.totalorder %s1516, 128
          %v1521 = vphi %v1513, %v1536
        $region31: #{tpu_custom_call.1} parent=27 // loop_header_branch
          %1519 = sbr.rel (%p1517) target = $region35
        $region32: #{tpu_custom_call.1} parent=27 // loop_body
          %s1522 = scalar_lea.vmem [#allocation3], %s1516
          %v1523 = vld [vmem:[%s1522] sm:$0x1]
          %v1524 = vstv %s1516
          %vm1525 = vcmp.eq.s32.totalorder %v248, %v1524
          %v1526 = vsel %vm1525, %v1521, 0.0
          %vm1527 = vcmask 1040384
          %v1528 = vsel %vm1527, %v1526, -inf
          %1529 = vmax.xlane.f32.xlu0 %v1528
          %v1530 = vpop.xlane.xlu0 %1529
          %vm1531 = vcmp.gt.f32.partialorder %v1523, 0.5
          %vm1532 = vcmp.gt.f32.partialorder %v1530, 0.5
          %v1533 = vsel %vm1532, 1, 0
          %vm1534 = vcmp.eq.s32.totalorder %v1533, 1
          %vm1535 = vmand %vm1531, %vm1534
          %v1536 = vsel %vm1535, 0.0, %v1521
        $region33: #{tpu_custom_call.1} parent=27 // loop_footer
          %s1520 = sadd.s32 1, %s1516
        $region34: #{tpu_custom_call.1} parent=27 // loop_footer_branch
          %1515 = sbr.rel target = $region30
        $region35: #{tpu_custom_call.1} parent=27 // loop_exit
          _
        %v1537 = vlaneseq
        %v1538 = vshrl.u32 %v1537, 7
        %v1539 = vsub.s32 0, %v1538
        %v1540 = vrot.slane %v1521, %v1539
        %v1541 = vld [vmem:[#allocation3] sm:$0xff]
        %v1542 = vld [vmem:[#allocation3 + $0x8] sm:$0xff]
        %v1543 = vld [vmem:[#allocation3 + $0x10] sm:$0xff]
        %v1544 = vld [vmem:[#allocation3 + $0x18] sm:$0xff]
        %v1545 = vld [vmem:[#allocation3 + $0x20] sm:$0xff]
        %v1546 = vld [vmem:[#allocation3 + $0x28] sm:$0xff]
        %v1547 = vld [vmem:[#allocation3 + $0x30] sm:$0xff]
        %v1548 = vld [vmem:[#allocation3 + $0x38] sm:$0xff]
        %v1549 = vld [vmem:[#allocation3 + $0x40] sm:$0xff]
        %v1550 = vld [vmem:[#allocation3 + $0x48] sm:$0xff]
        %v1551 = vld [vmem:[#allocation3 + $0x50] sm:$0xff]
        %v1552 = vld [vmem:[#allocation3 + $0x58] sm:$0xff]
        %v1553 = vld [vmem:[#allocation3 + $0x60] sm:$0xff]
        %v1554 = vld [vmem:[#allocation3 + $0x68] sm:$0xff]
        %v1555 = vld [vmem:[#allocation3 + $0x70] sm:$0xff]
        %v1556 = vld [vmem:[#allocation3 + $0x78] sm:$0xff]
        %1557 = vmatprep.subr.mxu0 0.0
        %1558 = vmatpush1.msra.mxu0 %v1541
        %1559 = vmatprep.subr.mxu0 0.0
        %1560 = vmatpush1.msra.mxu0 %v1542
        %1561 = vmatprep.subr.mxu0 0.0
        %1562 = vmatpush1.msra.mxu0 %v1543
        %1563 = vmatprep.subr.mxu0 0.0
        %1564 = vmatpush1.msra.mxu0 %v1544
        %1565 = vmatprep.subr.mxu0 0.0
        %1566 = vmatpush1.msra.mxu0 %v1545
        %1567 = vmatprep.subr.mxu0 0.0
        %1568 = vmatpush1.msra.mxu0 %v1546
        %1569 = vmatprep.subr.mxu0 0.0
        %1570 = vmatpush1.msra.mxu0 %v1547
        %1571 = vmatprep.subr.mxu0 0.0
        %1572 = vmatpush1.msra.mxu0 %v1548
        %1573 = vmatprep.subr.mxu0 0.0
        %1574 = vmatpush1.msra.mxu0 %v1549
        %1575 = vmatprep.subr.mxu0 0.0
        %1576 = vmatpush1.msra.mxu0 %v1550
        %1577 = vmatprep.subr.mxu0 0.0
        %1578 = vmatpush1.msra.mxu0 %v1551
        %1579 = vmatprep.subr.mxu0 0.0
        %1580 = vmatpush1.msra.mxu0 %v1552
        %1581 = vmatprep.subr.mxu0 0.0
        %1582 = vmatpush1.msra.mxu0 %v1553
        %1583 = vmatprep.subr.mxu0 0.0
        %1584 = vmatpush1.msra.mxu0 %v1554
        %1585 = vmatprep.subr.mxu0 0.0
        %1586 = vmatpush1.msra.mxu0 %v1555
        %1587 = vmatprep.subr.mxu0 0.0
        %1588 = vmatpush1.msra.mxu0 %v1556
        %1589 = vmatprep.subr.mxu0 0.0
        %1590 = vmatpush1.msra.mxu0 0.0
        %1591 = vmatprep.subr.mxu0 0.0
        %1592 = vmatpush1.msra.mxu0 0.0
        %1593 = vmatprep.subr.mxu0 0.0
        %1594 = vmatpush1.msra.mxu0 0.0
        %1595 = vmatprep.subr.mxu0 0.0
        %1596 = vmatpush1.msra.mxu0 0.0
        %1597 = vmatprep.subr.mxu0 0.0
        %1598 = vmatpush1.msra.mxu0 0.0
        %1599 = vmatprep.subr.mxu0 0.0
        %1600 = vmatpush1.msra.mxu0 0.0
        %1601 = vmatprep.subr.mxu0 0.0
        %1602 = vmatpush1.msra.mxu0 0.0
        %1603 = vmatprep.subr.mxu0 0.0
        %1604 = vmatpush1.msra.mxu0 0.0
        %1605 = vmatprep.subr.mxu0 0.0
        %1606 = vmatpush1.msra.mxu0 0.0
        %1607 = vmatprep.subr.mxu0 0.0
        %1608 = vmatpush1.msra.mxu0 0.0
        %1609 = vmatprep.subr.mxu0 0.0
        %1610 = vmatpush1.msra.mxu0 0.0
        %1611 = vmatprep.subr.mxu0 0.0
        %1612 = vmatpush1.msra.mxu0 0.0
        %1613 = vmatprep.subr.mxu0 0.0
        %1614 = vmatpush1.msra.mxu0 0.0
        %1615 = vmatprep.subr.mxu0 0.0
        %1616 = vmatpush1.msra.mxu0 0.0
        %1617 = vmatprep.subr.mxu0 0.0
        %1618 = vmatpush1.msra.mxu0 0.0
        %1619 = vmatprep.subr.mxu0 0.0
        %1620 = vmatpush1.msra.mxu0 0.0
        %1621 = vmatprep.mubr.f32.mxu0 0.0
        %1622 = vmatmul.mubr.f32.gmra.mrb[0].mxu0 %v1540
        %v1623 = vpop.f32.mrb[0].mxu0
        %v1624 = vadd.f32 0.0, %v1623
        %v1625 = vpop.f32.mrb[0].mxu0
        %1626 = vdwg.mxu0
        %vm1627 = vcmp.gt.f32.partialorder %v1624, 0.5
        %v1628 = vsel %vm1627, 0.0, %v1513
        %1629 = vst [vmem:[%s206] sm:$0x1] %v1628
        %s1630 = sand.u32 %s82, 1
        %s1631 = scalar_lea.sflag [#allocation5], %s1630
        %s1632 = sand.u32 %s82, 1
        %s1633 = scalar_lea.vmem [#allocation4], %s1632
        %s1634 = sand.u32 %s22, 1
        %s1635 = scalar_lea.sflag [#allocation7], %s1634
        %s1636 = sand.u32 %s108, 1
        %s1637 = smul.addr %s1636, 4
        %s1638 = scalar_lea.vmem [#allocation6], %s1637
        %s1639 = sand.u32 %s22, 1
        %s1640 = scalar_lea.sflag [#allocation7], %s1639
        %s1641 = sand.u32 %s134, 1
        %s1642 = scalar_lea.vmem [#allocation8], %s1641
        // Predicated region
        $region36: #{tpu_custom_call.1} parent=27 // pred_check
          %p1643 = pneg %p92
        $region37: #{tpu_custom_call.1} parent=27 // pred_check_branch
          %1645 = sbr.rel (%p1643) target = $region39
        $region38: #{tpu_custom_call.1} parent=27 // pred_region
          %s1647 = ssub.s32 16, 16
          %1648 = vsyncadd %s1631, %s1647
          %s1649 = smul.addr %s22, 16
          %s1650 = scalar_lea.hbm %s2, %s1649
          %s1652 = sshll.u32 %s1633, 4
          %s1653 = int_to_ptr.vmem [resolvable:$true] %s1652
          %1655 = dma.vmem_to_hbm [thread:$0]  %s1653, 16, %s1650, %s1631
        $region39: #{tpu_custom_call.1} parent=27 // pred_fallthru
          _
        // Predicated region
        $region40: #{tpu_custom_call.1} parent=27 // pred_check
          %p1656 = pneg %p118
        $region41: #{tpu_custom_call.1} parent=27 // pred_check_branch
          %1658 = sbr.rel (%p1656) target = $region43
        $region42: #{tpu_custom_call.1} parent=27 // pred_region
          %s1660 = ssub.s32 64, 64
          %1661 = vsyncadd %s1635, %s1660
          %s1662 = smul.addr %s22, 64
          %s1663 = scalar_lea.hbm %s3, %s1662
          %s1665 = sshll.u32 %s1638, 4
          %s1666 = int_to_ptr.vmem [resolvable:$true] %s1665
          %1668 = dma.vmem_to_hbm [thread:$0]  %s1666, 64, %s1663, %s1635
        $region43: #{tpu_custom_call.1} parent=27 // pred_fallthru
          _
        // Predicated region
        $region44: #{tpu_custom_call.1} parent=27 // pred_check
          %p1669 = pneg %p144
        $region45: #{tpu_custom_call.1} parent=27 // pred_check_branch
          %1671 = sbr.rel (%p1669) target = $region47
        $region46: #{tpu_custom_call.1} parent=27 // pred_region
          %s1673 = ssub.s32 16, 16
          %1674 = vsyncadd %s1640, %s1673
          %s1675 = smul.addr %s22, 16
          %s1676 = scalar_lea.hbm %s4, %s1675
          %s1678 = sshll.u32 %s1642, 4
          %s1679 = int_to_ptr.vmem [resolvable:$true] %s1678
          %1681 = dma.vmem_to_hbm [thread:$0]  %s1679, 16, %s1676, %s1640
        $region47: #{tpu_custom_call.1} parent=27 // pred_fallthru
          _
      $region28: #{tpu_custom_call.1} parent=5 // pred_fallthru
        _
      %p1682 = scmp.le.s32.totalorder 2, %s17
      // Predicated region
      $region48: #{tpu_custom_call.1} parent=5 // pred_check
        %p1683 = pneg %p1682
      $region49: #{tpu_custom_call.1} parent=5 // pred_check_branch
        %1685 = sbr.rel (%p1683) target = $region51
      $region50: #{tpu_custom_call.1} parent=5 // pred_region
        %s1686 = ssub.s32 %s17, 2
        // Predicated region
        $region52: #{tpu_custom_call.1} parent=50 // pred_check
          %p1687 = pneg %p98
        $region53: #{tpu_custom_call.1} parent=50 // pred_check_branch
          %1689 = sbr.rel (%p1687) target = $region55
        $region54: #{tpu_custom_call.1} parent=50 // pred_region
          %s1690 = sand.u32 %s83, 1
          %s1691 = scalar_lea.sflag [#allocation5], %s1690
          %s1692 = sand.u32 %s83, 1
          %s1693 = scalar_lea.vmem [#allocation4], %s1692
          %1694 = dma.done %s1691, 16
        $region55: #{tpu_custom_call.1} parent=50 // pred_fallthru
          _
        // Predicated region
        $region56: #{tpu_custom_call.1} parent=50 // pred_check
          %p1695 = pneg %p124
        $region57: #{tpu_custom_call.1} parent=50 // pred_check_branch
          %1697 = sbr.rel (%p1695) target = $region59
        $region58: #{tpu_custom_call.1} parent=50 // pred_region
          %s1698 = sand.u32 %s23, 1
          %s1699 = scalar_lea.sflag [#allocation7], %s1698
          %s1700 = sand.u32 %s109, 1
          %s1701 = smul.addr %s1700, 4
          %s1702 = scalar_lea.vmem [#allocation6], %s1701
          %1703 = dma.done %s1699, 64
        $region59: #{tpu_custom_call.1} parent=50 // pred_fallthru
          _
        // Predicated region
        $region60: #{tpu_custom_call.1} parent=50 // pred_check
          %p1704 = pneg %p150
        $region61: #{tpu_custom_call.1} parent=50 // pred_check_branch
          %1706 = sbr.rel (%p1704) target = $region63
        $region62: #{tpu_custom_call.1} parent=50 // pred_region
          %s1707 = sand.u32 %s23, 1
          %s1708 = scalar_lea.sflag [#allocation7], %s1707
          %s1709 = sand.u32 %s135, 1
          %s1710 = scalar_lea.vmem [#allocation8], %s1709
          %1711 = dma.done %s1708, 16
        $region63: #{tpu_custom_call.1} parent=50 // pred_fallthru
          _
      $region51: #{tpu_custom_call.1} parent=5 // pred_fallthru
        _
    $region6: #{tpu_custom_call.1} parent=1 // loop_footer
      %s21 = sadd.s32 1, %s17
    $region7: #{tpu_custom_call.1} parent=1 // loop_footer_branch
      %16 = sbr.rel target = $region3
    $region8: #{tpu_custom_call.1} parent=1 // loop_exit
      _
    %1712 = vsyncpa [#allocation5], 1
    %s1713 = scalar_lea.sflag [#allocation5], 1
    %1714 = vsyncpa %s1713, 1
    %1715 = vsyncpa [#allocation7], 1
    %s1716 = scalar_lea.sflag [#allocation7], 1
    %1717 = vsyncpa %s1716, 1

</llo_original>
